<compile_context>
chip_gen: v6e
topology: v6e:2x2x1
jax: 0.10.0
libtpu: 0.0.40
codegen_flags: <defaults>
</compile_context>

<pallas_src>
import jax
import jax.numpy as jnp
from jax import lax
from jax.experimental import pallas as pl
from jax.experimental.pallas import tpu as pltpu

POOL = 5      # maxpool kernel/stride
K1 = 100      # conv1 kernel size (1 -> 3 channels)
K2 = 10       # conv2 kernel size (3 -> 6 channels)
L_IN = 4369   # input length pinned by Linear(1014, 128)
T1 = 128      # conv1 contraction width (needs 124, padded to 128 for alignment)
M1 = 171      # stage-1 output columns: 854 pooled positions packed 5-per-column
M2 = 169      # pooled positions after stage 2 (= 1014 / 6)


# ------------------------------ Fused kernel --------------------------------
# Row layouts:
#   acc1 rows: p*16 + (c*5 + r)   p = pool offset, c = conv1 channel,
#                                 r = sub-position  (jp1 = 5*m + r)
#   h1   rows: c*5 + r            (row 15 is zero padding)
#   acc2 rows: p*8 + c2           c2 = conv2 channel (rows 6,7 per group = pad)
#   h2   rows: c2                 (rows 6,7 zero)   columns = pooled position

def _fused_forward_kernel(xw_ref, w1_ref, b1_ref, w2_ref, b2_ref,
                          fw1_ref, fb1_ref, fw2_ref, fb2_ref, o_ref):
    # ---- conv1 + relu + maxpool(5): ONE MXU matmul + aligned 5-group max ----
    acc1 = jnp.dot(w1_ref[...], xw_ref[0],
                   preferred_element_type=jnp.float32)        # (80, 171)
    m1 = acc1[0:16]
    for p in range(1, POOL):
        m1 = jnp.maximum(m1, acc1[16 * p:16 * (p + 1)])
    h1 = jnp.maximum(m1 + b1_ref[...], 0.0)                   # (16, 171)

    # ---- conv2 + relu + maxpool(5): 3 shifted matmuls + 5-group max ---------
    acc2 = jnp.dot(w2_ref[0], h1[:, 0:M2],
                   preferred_element_type=jnp.float32)        # (40, 169)
    for a in range(1, 3):
        acc2 = acc2 + jnp.dot(w2_ref[a], h1[:, a:a + M2],
                              preferred_element_type=jnp.float32)
    m2 = acc2[0:8]
    for p in range(1, POOL):
        m2 = jnp.maximum(m2, acc2[8 * p:8 * (p + 1)])
    h2 = jnp.maximum(m2 + b2_ref[...], 0.0)                   # (8, 169)

    # ---- fc1 + relu: contract over (channel, position), PyTorch flat order --
    h = fb1_ref[...]                                          # (1, 128)
    for c in range(6):
        h = h + jnp.dot(h2[c:c + 1, :], fw1_ref[c],
                        preferred_element_type=jnp.float32)
    h = jnp.maximum(h, 0.0)

    # ---- fc2 (no relu), lane-dense 128-wide store ---------------------------
    o_ref[0] = jnp.dot(h, fw2_ref[...],
                       preferred_element_type=jnp.float32) + fb2_ref[...]


# -------------------------------- Wrapper ------------------------------------

def conv_net_1d_00_forward(x, kp):
    # x: (N, 1, L) float32 (PyTorch NCW layout)
    N, _, L = x.shape
    assert L == L_IN, L
    xs = x[:, 0, :]

    # Stride-25, width-T1 windows: xw[n, t, m] = x[n, 25*m + t]  (~5x the signal)
    pad_len = 25 * (M1 - 1) + T1                      # 4378
    xpad = jnp.pad(xs, ((0, 0), (0, pad_len - L)))
    t = jnp.arange(T1)[:, None]
    m = jnp.arange(M1)[None, :]
    xw = xpad[:, 25 * m + t]                          # (N, T1, M1)

    flops = int(N * 2 * (80 * T1 * M1 + 3 * 40 * 16 * M2
                         + 6 * M2 * 128 + 128 * 128))
    bytes_accessed = int(4 * (N * T1 * M1 + 80 * T1 + 16 + 3 * 40 * 16 + 8
                              + 6 * M2 * 128 + 128 + 128 * 128 + 128 + N * 128))

    out = pl.pallas_call(
        _fused_forward_kernel,
        out_shape=jax.ShapeDtypeStruct((N, 1, 128), jnp.float32),
        grid=(N,),
        in_specs=[
            pl.BlockSpec((1, T1, M1), lambda n: (n, 0, 0)),    # signal windows
            pl.BlockSpec((80, T1), lambda n: (0, 0)),          # conv1+pool weight
            pl.BlockSpec((16, 1), lambda n: (0, 0)),           # conv1 bias (rows)
            pl.BlockSpec((3, 40, 16), lambda n: (0, 0, 0)),    # conv2+pool weight
            pl.BlockSpec((8, 1), lambda n: (0, 0)),            # conv2 bias (rows)
            pl.BlockSpec((6, M2, 128), lambda n: (0, 0, 0)),   # fc1 weight
            pl.BlockSpec((1, 128), lambda n: (0, 0)),          # fc1 bias
            pl.BlockSpec((128, 128), lambda n: (0, 0)),        # fc2 weight (padded)
            pl.BlockSpec((1, 128), lambda n: (0, 0)),          # fc2 bias  (padded)
        ],
        out_specs=pl.BlockSpec((1, 1, 128), lambda n: (n, 0, 0)),
        compiler_params=pltpu.CompilerParams(
            dimension_semantics=("parallel",)),
        cost_estimate=pl.CostEstimate(flops=flops, transcendentals=0,
                                      bytes_accessed=bytes_accessed),
    )(xw, kp["w1cat"], kp["b1col"], kp["w2blk"], kp["b2col"],
      kp["fw1r"], kp["fb1"], kp["fw2p"], kp["fb2p"])

    return out[:, 0, :88]


# -------------------- Weight restructuring (done once, tiny) ------------------

def prepare_kernel_params(raw):
    f32 = jnp.float32
    w1 = raw["conv1_w"][:, 0, :].astype(f32)           # (3, 100)
    b1 = raw["conv1_b"].astype(f32)                    # (3,)
    w2 = raw["conv2_w"].astype(f32)                    # (6, 3, 10)
    b2 = raw["conv2_b"].astype(f32)                    # (6,)

    # conv1+pool: W1cat[p*16 + c*5 + r, t] = w1[c, t - 5r - p]  (else 0)
    p = jnp.arange(5)[:, None, None, None]
    c = jnp.arange(3)[None, :, None, None]
    r = jnp.arange(5)[None, None, :, None]
    t = jnp.arange(T1)[None, None, None, :]
    k = t - 5 * r - p
    vals = jnp.where((k >= 0) & (k < K1), w1[c, jnp.clip(k, 0, K1 - 1)], 0.0)
    w1cat = jnp.zeros((5, 16, T1), f32).at[:, :15, :].set(
        vals.reshape(5, 15, T1)).reshape(80, T1)
    b1col = jnp.zeros((16, 1), f32).at[:15, 0].set(jnp.repeat(b1, 5))

    # conv2+pool: W2blk[a, p*8 + c2, c*5 + r] = w2[c2, c, 5a + r - p]  (else 0)
    a = jnp.arange(3)[:, None, None, None, None]
    p = jnp.arange(5)[None, :, None, None, None]
    c2 = jnp.arange(6)[None, None, :, None, None]
    c = jnp.arange(3)[None, None, None, :, None]
    r = jnp.arange(5)[None, None, None, None, :]
    k = 5 * a + r - p
    vals = jnp.where((k >= 0) & (k < K2), w2[c2, c, jnp.clip(k, 0, K2 - 1)], 0.0)
    w2blk = jnp.zeros((3, 5, 8, 16), f32).at[:, :, :6, :15].set(
        vals.reshape(3, 5, 6, 15)).reshape(3, 40, 16)
    b2col = jnp.zeros((8, 1), f32).at[:6, 0].set(b2)

    # fc1: (128, 1014) -> (1014, 128) -> (6, 169, 128)  [PyTorch c*169+l order]
    fw1r = raw["fc1_w"].T.reshape(6, M2, 128).astype(f32)
    fb1 = raw["fc1_b"].reshape(1, 128).astype(f32)
    # fc2: (88, 128) -> (128, 88) -> zero-pad output columns to 128 (lane dense)
    fw2p = jnp.zeros((128, 128), f32).at[:, :88].set(raw["fc2_w"].T)
    fb2p = jnp.zeros((1, 128), f32).at[0, :88].set(raw["fc2_b"])

    return dict(w1cat=w1cat, b1col=b1col, w2blk=w2blk, b2col=b2col,
                fw1r=fw1r, fb1=fb1, fw2p=fw2p, fb2p=fb2p)


# --------------------------- Parameter init -----------------------------------

def init_raw_params(key):
    def uinit(k, shape, fan_in):
        bound = 1.0 / jnp.sqrt(jnp.float32(fan_in))
        return jax.random.uniform(k, shape, jnp.float32, -bound, bound)

    ks = jax.random.split(key, 8)
    return {
        "conv1_w": uinit(ks[0], (3, 1, 100), 1 * 100),
        "conv1_b": uinit(ks[1], (3,), 1 * 100),
        "conv2_w": uinit(ks[2], (6, 3, 10), 3 * 10),
        "conv2_b": uinit(ks[3], (6,), 3 * 10),
        "fc1_w": uinit(ks[4], (128, 1014), 1014),
        "fc1_b": uinit(ks[5], (128,), 1014),
        "fc2_w": uinit(ks[6], (88, 128), 128),
        "fc2_b": uinit(ks[7], (88,), 128),
    }


# --------------------------- Pure-JAX reference -------------------------------

def reference_forward(x, raw):
    def conv1d(inp, w, b):
        out = lax.conv_general_dilated(
            inp, w, (1,), "VALID",
            dimension_numbers=("NCH", "OIH", "NCH"),
            precision=lax.Precision.HIGHEST)
        return out + b[None, :, None]

    def maxpool(inp, k):
        return lax.reduce_window(inp, -jnp.inf, lax.max,
                                 (1, 1, k), (1, 1, k), "VALID")

    h = maxpool(jax.nn.relu(conv1d(x, raw["conv1_w"], raw["conv1_b"])), POOL)
    h = maxpool(jax.nn.relu(conv1d(h, raw["conv2_w"], raw["conv2_b"])), POOL)
    h = h.reshape(h.shape[0], -1)                                   # (N, 1014)
    h = jax.nn.relu(jnp.dot(h, raw["fc1_w"].T,
                            precision=lax.Precision.HIGHEST) + raw["fc1_b"])
    # NOTE: no relu after fc2 (matches the PyTorch module).
    return jnp.dot(h, raw["fc2_w"].T,
                   precision=lax.Precision.HIGHEST) + raw["fc2_b"]


# ---------------------------------- Main ---------------------------------------

if __name__ == "__main__":
    key = jax.random.PRNGKey(0)
    k_param, k_x = jax.random.split(key)

    N, L = 2, L_IN   # L pinned by Linear(1014,128): 6 ch * 169 pooled positions
    x = jax.random.normal(k_x, (N, 1, L), jnp.float32)

    raw = init_raw_params(k_param)
    kp = prepare_kernel_params(raw)

    fwd = jax.jit(conv_net_1d_00_forward)
    out = jax.block_until_ready(fwd(x, kp))
    assert out.shape == (N, 88), out.shape

    ref = jax.block_until_ready(reference_forward(x, raw))
    err = float(jnp.max(jnp.abs(out - ref)))
    # Default (bf16-pass) MXU precision per the perf review; 5e-3 covers its
    # rounding vs. the f32 HIGHEST-precision reference.
    assert jnp.allclose(out, ref, rtol=5e-3, atol=5e-3), err

    print("KERNEL_OK")
</pallas_src>

<mosaic_0001>
module attributes {stable_mosaic.version = 11 : i64} {
  func.func @_fused_forward_kernel(%arg0: i32, %arg1: memref<1x128x171xf32, #tpu.memory_space<vmem>>, %arg2: memref<80x128xf32, #tpu.memory_space<vmem>>, %arg3: memref<16x1xf32, #tpu.memory_space<vmem>>, %arg4: memref<3x40x16xf32, #tpu.memory_space<vmem>>, %arg5: memref<8x1xf32, #tpu.memory_space<vmem>>, %arg6: memref<6x169x128xf32, #tpu.memory_space<vmem>>, %arg7: memref<1x128xf32, #tpu.memory_space<vmem>>, %arg8: memref<128x128xf32, #tpu.memory_space<vmem>>, %arg9: memref<1x128xf32, #tpu.memory_space<vmem>>, %arg10: memref<1x1x128xf32, #tpu.memory_space<vmem>>) attributes {dimension_semantics = [#tpu.dimension_semantics<parallel>], iteration_bounds = array<i64: 2>, scalar_prefetch = 0 : i64, scratch_operands = 0 : i64, tpu.core_type = #tpu.core_type<tc>, window_params = [{transform_indices = @transform_0, window_bounds = array<i64: 1, 128, 171>}, {pipeline_mode = #tpu.pipeline_mode<synchronous>, transform_indices = @transform_1, window_bounds = array<i64: 80, 128>}, {pipeline_mode = #tpu.pipeline_mode<synchronous>, transform_indices = @transform_2, window_bounds = array<i64: 16, 1>}, {pipeline_mode = #tpu.pipeline_mode<synchronous>, transform_indices = @transform_3, window_bounds = array<i64: 3, 40, 16>}, {pipeline_mode = #tpu.pipeline_mode<synchronous>, transform_indices = @transform_4, window_bounds = array<i64: 8, 1>}, {pipeline_mode = #tpu.pipeline_mode<synchronous>, transform_indices = @transform_5, window_bounds = array<i64: 6, 169, 128>}, {pipeline_mode = #tpu.pipeline_mode<synchronous>, transform_indices = @transform_6, window_bounds = array<i64: 1, 128>}, {pipeline_mode = #tpu.pipeline_mode<synchronous>, transform_indices = @transform_7, window_bounds = array<i64: 128, 128>}, {pipeline_mode = #tpu.pipeline_mode<synchronous>, transform_indices = @transform_8, window_bounds = array<i64: 1, 128>}, {transform_indices = @transform_9, window_bounds = array<i64: 1, 1, 128>}]} {
    %c0 = arith.constant 0 : index
    %c0_0 = arith.constant 0 : index
    %0 = vector.load %arg2[%c0, %c0_0] : memref<80x128xf32, #tpu.memory_space<vmem>>, vector<80x128xf32>
    %c0_1 = arith.constant 0 : index
    %c0_2 = arith.constant 0 : index
    %c0_3 = arith.constant 0 : index
    %1 = vector.load %arg1[%c0_1, %c0_2, %c0_3] : memref<1x128x171xf32, #tpu.memory_space<vmem>>, vector<1x128x171xf32>
    %2 = vector.shape_cast %1 : vector<1x128x171xf32> to vector<128x171xf32>
    %cst = arith.constant dense<0.000000e+00> : vector<80x171xf32>
    %3 = tpu.matmul %0, %2, %cst {dimension_numbers = #tpu.dot_dimension_numbers<[1], [0], [0], [1], [0, 0, 1, 1], [], []>} : vector<80x128xf32>, vector<128x171xf32>, vector<80x171xf32> -> vector<80x171xf32>
    %4 = vector.extract_strided_slice %3 {offsets = [0, 0], sizes = [16, 171], strides = [1, 1]} : vector<80x171xf32> to vector<16x171xf32>
    %5 = vector.extract_strided_slice %3 {offsets = [16, 0], sizes = [16, 171], strides = [1, 1]} : vector<80x171xf32> to vector<16x171xf32>
    %6 = arith.maximumf %4, %5 : vector<16x171xf32>
    %7 = vector.extract_strided_slice %3 {offsets = [32, 0], sizes = [16, 171], strides = [1, 1]} : vector<80x171xf32> to vector<16x171xf32>
    %8 = arith.maximumf %6, %7 : vector<16x171xf32>
    %9 = vector.extract_strided_slice %3 {offsets = [48, 0], sizes = [16, 171], strides = [1, 1]} : vector<80x171xf32> to vector<16x171xf32>
    %10 = arith.maximumf %8, %9 : vector<16x171xf32>
    %11 = vector.extract_strided_slice %3 {offsets = [64, 0], sizes = [16, 171], strides = [1, 1]} : vector<80x171xf32> to vector<16x171xf32>
    %12 = arith.maximumf %10, %11 : vector<16x171xf32>
    %c0_4 = arith.constant 0 : index
    %c0_5 = arith.constant 0 : index
    %13 = vector.load %arg3[%c0_4, %c0_5] : memref<16x1xf32, #tpu.memory_space<vmem>>, vector<16x1xf32>
    %14 = vector.broadcast %13 : vector<16x1xf32> to vector<16x171xf32>
    %15 = arith.addf %12, %14 : vector<16x171xf32>
    %cst_6 = arith.constant 0.000000e+00 : f32
    %16 = vector.broadcast %cst_6 : f32 to vector<16x171xf32>
    %17 = arith.maximumf %15, %16 : vector<16x171xf32>
    %c0_7 = arith.constant 0 : index
    %c0_8 = arith.constant 0 : index
    %c0_9 = arith.constant 0 : index
    %18 = vector.load %arg4[%c0_7, %c0_8, %c0_9] : memref<3x40x16xf32, #tpu.memory_space<vmem>>, vector<1x40x16xf32>
    %19 = vector.shape_cast %18 : vector<1x40x16xf32> to vector<40x16xf32>
    %20 = vector.extract_strided_slice %17 {offsets = [0, 0], sizes = [16, 169], strides = [1, 1]} : vector<16x171xf32> to vector<16x169xf32>
    %cst_10 = arith.constant dense<0.000000e+00> : vector<40x169xf32>
    %21 = tpu.matmul %19, %20, %cst_10 {dimension_numbers = #tpu.dot_dimension_numbers<[1], [0], [0], [1], [0, 0, 1, 1], [], []>} : vector<40x16xf32>, vector<16x169xf32>, vector<40x169xf32> -> vector<40x169xf32>
    %c1 = arith.constant 1 : index
    %c0_11 = arith.constant 0 : index
    %c0_12 = arith.constant 0 : index
    %22 = vector.load %arg4[%c1, %c0_11, %c0_12] : memref<3x40x16xf32, #tpu.memory_space<vmem>>, vector<1x40x16xf32>
    %23 = vector.shape_cast %22 : vector<1x40x16xf32> to vector<40x16xf32>
    %24 = vector.extract_strided_slice %17 {offsets = [0, 1], sizes = [16, 169], strides = [1, 1]} : vector<16x171xf32> to vector<16x169xf32>
    %cst_13 = arith.constant dense<0.000000e+00> : vector<40x169xf32>
    %25 = tpu.matmul %23, %24, %cst_13 {dimension_numbers = #tpu.dot_dimension_numbers<[1], [0], [0], [1], [0, 0, 1, 1], [], []>} : vector<40x16xf32>, vector<16x169xf32>, vector<40x169xf32> -> vector<40x169xf32>
    %26 = arith.addf %21, %25 : vector<40x169xf32>
    %c2 = arith.constant 2 : index
    %c0_14 = arith.constant 0 : index
    %c0_15 = arith.constant 0 : index
    %27 = vector.load %arg4[%c2, %c0_14, %c0_15] : memref<3x40x16xf32, #tpu.memory_space<vmem>>, vector<1x40x16xf32>
    %28 = vector.shape_cast %27 : vector<1x40x16xf32> to vector<40x16xf32>
    %29 = vector.extract_strided_slice %17 {offsets = [0, 2], sizes = [16, 169], strides = [1, 1]} : vector<16x171xf32> to vector<16x169xf32>
    %cst_16 = arith.constant dense<0.000000e+00> : vector<40x169xf32>
    %30 = tpu.matmul %28, %29, %cst_16 {dimension_numbers = #tpu.dot_dimension_numbers<[1], [0], [0], [1], [0, 0, 1, 1], [], []>} : vector<40x16xf32>, vector<16x169xf32>, vector<40x169xf32> -> vector<40x169xf32>
    %31 = arith.addf %26, %30 : vector<40x169xf32>
    %32 = vector.extract_strided_slice %31 {offsets = [0, 0], sizes = [8, 169], strides = [1, 1]} : vector<40x169xf32> to vector<8x169xf32>
    %33 = vector.extract_strided_slice %31 {offsets = [8, 0], sizes = [8, 169], strides = [1, 1]} : vector<40x169xf32> to vector<8x169xf32>
    %34 = arith.maximumf %32, %33 : vector<8x169xf32>
    %35 = vector.extract_strided_slice %31 {offsets = [16, 0], sizes = [8, 169], strides = [1, 1]} : vector<40x169xf32> to vector<8x169xf32>
    %36 = arith.maximumf %34, %35 : vector<8x169xf32>
    %37 = vector.extract_strided_slice %31 {offsets = [24, 0], sizes = [8, 169], strides = [1, 1]} : vector<40x169xf32> to vector<8x169xf32>
    %38 = arith.maximumf %36, %37 : vector<8x169xf32>
    %39 = vector.extract_strided_slice %31 {offsets = [32, 0], sizes = [8, 169], strides = [1, 1]} : vector<40x169xf32> to vector<8x169xf32>
    %40 = arith.maximumf %38, %39 : vector<8x169xf32>
    %c0_17 = arith.constant 0 : index
    %c0_18 = arith.constant 0 : index
    %41 = vector.load %arg5[%c0_17, %c0_18] : memref<8x1xf32, #tpu.memory_space<vmem>>, vector<8x1xf32>
    %42 = vector.broadcast %41 : vector<8x1xf32> to vector<8x169xf32>
    %43 = arith.addf %40, %42 : vector<8x169xf32>
    %cst_19 = arith.constant 0.000000e+00 : f32
    %44 = vector.broadcast %cst_19 : f32 to vector<8x169xf32>
    %45 = arith.maximumf %43, %44 : vector<8x169xf32>
    %c0_20 = arith.constant 0 : index
    %c0_21 = arith.constant 0 : index
    %46 = vector.load %arg7[%c0_20, %c0_21] : memref<1x128xf32, #tpu.memory_space<vmem>>, vector<1x128xf32>
    %47 = vector.extract_strided_slice %45 {offsets = [0, 0], sizes = [1, 169], strides = [1, 1]} : vector<8x169xf32> to vector<1x169xf32>
    %c0_22 = arith.constant 0 : index
    %c0_23 = arith.constant 0 : index
    %c0_24 = arith.constant 0 : index
    %48 = vector.load %arg6[%c0_22, %c0_23, %c0_24] : memref<6x169x128xf32, #tpu.memory_space<vmem>>, vector<1x169x128xf32>
    %49 = vector.shape_cast %48 : vector<1x169x128xf32> to vector<169x128xf32>
    %cst_25 = arith.constant dense<0.000000e+00> : vector<1x128xf32>
    %50 = tpu.matmul %47, %49, %cst_25 {dimension_numbers = #tpu.dot_dimension_numbers<[1], [0], [0], [1], [0, 0, 1, 1], [], []>} : vector<1x169xf32>, vector<169x128xf32>, vector<1x128xf32> -> vector<1x128xf32>
    %51 = arith.addf %46, %50 : vector<1x128xf32>
    %52 = vector.extract_strided_slice %45 {offsets = [1, 0], sizes = [1, 169], strides = [1, 1]} : vector<8x169xf32> to vector<1x169xf32>
    %c1_26 = arith.constant 1 : index
    %c0_27 = arith.constant 0 : index
    %c0_28 = arith.constant 0 : index
    %53 = vector.load %arg6[%c1_26, %c0_27, %c0_28] : memref<6x169x128xf32, #tpu.memory_space<vmem>>, vector<1x169x128xf32>
    %54 = vector.shape_cast %53 : vector<1x169x128xf32> to vector<169x128xf32>
    %cst_29 = arith.constant dense<0.000000e+00> : vector<1x128xf32>
    %55 = tpu.matmul %52, %54, %cst_29 {dimension_numbers = #tpu.dot_dimension_numbers<[1], [0], [0], [1], [0, 0, 1, 1], [], []>} : vector<1x169xf32>, vector<169x128xf32>, vector<1x128xf32> -> vector<1x128xf32>
    %56 = arith.addf %51, %55 : vector<1x128xf32>
    %57 = vector.extract_strided_slice %45 {offsets = [2, 0], sizes = [1, 169], strides = [1, 1]} : vector<8x169xf32> to vector<1x169xf32>
    %c2_30 = arith.constant 2 : index
    %c0_31 = arith.constant 0 : index
    %c0_32 = arith.constant 0 : index
    %58 = vector.load %arg6[%c2_30, %c0_31, %c0_32] : memref<6x169x128xf32, #tpu.memory_space<vmem>>, vector<1x169x128xf32>
    %59 = vector.shape_cast %58 : vector<1x169x128xf32> to vector<169x128xf32>
    %cst_33 = arith.constant dense<0.000000e+00> : vector<1x128xf32>
    %60 = tpu.matmul %57, %59, %cst_33 {dimension_numbers = #tpu.dot_dimension_numbers<[1], [0], [0], [1], [0, 0, 1, 1], [], []>} : vector<1x169xf32>, vector<169x128xf32>, vector<1x128xf32> -> vector<1x128xf32>
    %61 = arith.addf %56, %60 : vector<1x128xf32>
    %62 = vector.extract_strided_slice %45 {offsets = [3, 0], sizes = [1, 169], strides = [1, 1]} : vector<8x169xf32> to vector<1x169xf32>
    %c3 = arith.constant 3 : index
    %c0_34 = arith.constant 0 : index
    %c0_35 = arith.constant 0 : index
    %63 = vector.load %arg6[%c3, %c0_34, %c0_35] : memref<6x169x128xf32, #tpu.memory_space<vmem>>, vector<1x169x128xf32>
    %64 = vector.shape_cast %63 : vector<1x169x128xf32> to vector<169x128xf32>
    %cst_36 = arith.constant dense<0.000000e+00> : vector<1x128xf32>
    %65 = tpu.matmul %62, %64, %cst_36 {dimension_numbers = #tpu.dot_dimension_numbers<[1], [0], [0], [1], [0, 0, 1, 1], [], []>} : vector<1x169xf32>, vector<169x128xf32>, vector<1x128xf32> -> vector<1x128xf32>
    %66 = arith.addf %61, %65 : vector<1x128xf32>
    %67 = vector.extract_strided_slice %45 {offsets = [4, 0], sizes = [1, 169], strides = [1, 1]} : vector<8x169xf32> to vector<1x169xf32>
    %c4 = arith.constant 4 : index
    %c0_37 = arith.constant 0 : index
    %c0_38 = arith.constant 0 : index
    %68 = vector.load %arg6[%c4, %c0_37, %c0_38] : memref<6x169x128xf32, #tpu.memory_space<vmem>>, vector<1x169x128xf32>
    %69 = vector.shape_cast %68 : vector<1x169x128xf32> to vector<169x128xf32>
    %cst_39 = arith.constant dense<0.000000e+00> : vector<1x128xf32>
    %70 = tpu.matmul %67, %69, %cst_39 {dimension_numbers = #tpu.dot_dimension_numbers<[1], [0], [0], [1], [0, 0, 1, 1], [], []>} : vector<1x169xf32>, vector<169x128xf32>, vector<1x128xf32> -> vector<1x128xf32>
    %71 = arith.addf %66, %70 : vector<1x128xf32>
    %72 = vector.extract_strided_slice %45 {offsets = [5, 0], sizes = [1, 169], strides = [1, 1]} : vector<8x169xf32> to vector<1x169xf32>
    %c5 = arith.constant 5 : index
    %c0_40 = arith.constant 0 : index
    %c0_41 = arith.constant 0 : index
    %73 = vector.load %arg6[%c5, %c0_40, %c0_41] : memref<6x169x128xf32, #tpu.memory_space<vmem>>, vector<1x169x128xf32>
    %74 = vector.shape_cast %73 : vector<1x169x128xf32> to vector<169x128xf32>
    %cst_42 = arith.constant dense<0.000000e+00> : vector<1x128xf32>
    %75 = tpu.matmul %72, %74, %cst_42 {dimension_numbers = #tpu.dot_dimension_numbers<[1], [0], [0], [1], [0, 0, 1, 1], [], []>} : vector<1x169xf32>, vector<169x128xf32>, vector<1x128xf32> -> vector<1x128xf32>
    %76 = arith.addf %71, %75 : vector<1x128xf32>
    %cst_43 = arith.constant 0.000000e+00 : f32
    %77 = vector.broadcast %cst_43 : f32 to vector<1x128xf32>
    %78 = arith.maximumf %76, %77 : vector<1x128xf32>
    %c0_44 = arith.constant 0 : index
    %c0_45 = arith.constant 0 : index
    %79 = vector.load %arg8[%c0_44, %c0_45] : memref<128x128xf32, #tpu.memory_space<vmem>>, vector<128x128xf32>
    %cst_46 = arith.constant dense<0.000000e+00> : vector<1x128xf32>
    %80 = tpu.matmul %78, %79, %cst_46 {dimension_numbers = #tpu.dot_dimension_numbers<[1], [0], [0], [1], [0, 0, 1, 1], [], []>} : vector<1x128xf32>, vector<128x128xf32>, vector<1x128xf32> -> vector<1x128xf32>
    %c0_47 = arith.constant 0 : index
    %c0_48 = arith.constant 0 : index
    %81 = vector.load %arg9[%c0_47, %c0_48] : memref<1x128xf32, #tpu.memory_space<vmem>>, vector<1x128xf32>
    %82 = arith.addf %80, %81 : vector<1x128xf32>
    %c0_49 = arith.constant 0 : index
    %c0_50 = arith.constant 0 : index
    %c0_51 = arith.constant 0 : index
    %83 = vector.load %arg10[%c0_49, %c0_50, %c0_51] : memref<1x1x128xf32, #tpu.memory_space<vmem>>, vector<1x1x128xf32>
    %84 = vector.shape_cast %83 : vector<1x1x128xf32> to vector<1x128xf32>
    %85 = vector.shape_cast %82 : vector<1x128xf32> to vector<1x1x128xf32>
    tpu.vector_store %arg10[%c0_49, %c0_50, %c0_51], %85 {strides = array<i32>} : memref<1x1x128xf32, #tpu.memory_space<vmem>>, vector<1x1x128xf32>,
    return
  }
  func.func @transform_0(%arg0: i32) -> (i32, i32, i32) {
    %c0_i32 = arith.constant 0 : i32
    %c0_i32_0 = arith.constant 0 : i32
    %c0_i32_1 = arith.constant 0 : i32
    return %arg0, %c0_i32, %c0_i32_0 : i32, i32, i32
  }
  func.func @transform_1(%arg0: i32) -> (i32, i32) {
    %c0_i32 = arith.constant 0 : i32
    %c0_i32_0 = arith.constant 0 : i32
    %c0_i32_1 = arith.constant 0 : i32
    return %c0_i32, %c0_i32_0 : i32, i32
  }
  func.func @transform_2(%arg0: i32) -> (i32, i32) {
    %c0_i32 = arith.constant 0 : i32
    %c0_i32_0 = arith.constant 0 : i32
    %c0_i32_1 = arith.constant 0 : i32
    return %c0_i32, %c0_i32_0 : i32, i32
  }
  func.func @transform_3(%arg0: i32) -> (i32, i32, i32) {
    %c0_i32 = arith.constant 0 : i32
    %c0_i32_0 = arith.constant 0 : i32
    %c0_i32_1 = arith.constant 0 : i32
    %c0_i32_2 = arith.constant 0 : i32
    return %c0_i32, %c0_i32_0, %c0_i32_1 : i32, i32, i32
  }
  func.func @transform_4(%arg0: i32) -> (i32, i32) {
    %c0_i32 = arith.constant 0 : i32
    %c0_i32_0 = arith.constant 0 : i32
    %c0_i32_1 = arith.constant 0 : i32
    return %c0_i32, %c0_i32_0 : i32, i32
  }
  func.func @transform_5(%arg0: i32) -> (i32, i32, i32) {
    %c0_i32 = arith.constant 0 : i32
    %c0_i32_0 = arith.constant 0 : i32
    %c0_i32_1 = arith.constant 0 : i32
    %c0_i32_2 = arith.constant 0 : i32
    return %c0_i32, %c0_i32_0, %c0_i32_1 : i32, i32, i32
  }
  func.func @transform_6(%arg0: i32) -> (i32, i32) {
    %c0_i32 = arith.constant 0 : i32
    %c0_i32_0 = arith.constant 0 : i32
    %c0_i32_1 = arith.constant 0 : i32
    return %c0_i32, %c0_i32_0 : i32, i32
  }
  func.func @transform_7(%arg0: i32) -> (i32, i32) {
    %c0_i32 = arith.constant 0 : i32
    %c0_i32_0 = arith.constant 0 : i32
    %c0_i32_1 = arith.constant 0 : i32
    return %c0_i32, %c0_i32_0 : i32, i32
  }
  func.func @transform_8(%arg0: i32) -> (i32, i32) {
    %c0_i32 = arith.constant 0 : i32
    %c0_i32_0 = arith.constant 0 : i32
    %c0_i32_1 = arith.constant 0 : i32
    return %c0_i32, %c0_i32_0 : i32, i32
  }
  func.func @transform_9(%arg0: i32) -> (i32, i32, i32) {
    %c0_i32 = arith.constant 0 : i32
    %c0_i32_0 = arith.constant 0 : i32
    %c0_i32_1 = arith.constant 0 : i32
    return %arg0, %c0_i32, %c0_i32_0 : i32, i32, i32
  }
}

</mosaic_0001>

<llo_original>
// kernel: conv_net_1d_00_forward.1
$region0: #{conv_net_1d_00_forward.1}
  #allocation0 [shape = 'u32[]', space=smem, size = 0x4, offset = 0x4, fixed_abs, tag = 'smem constant byte address 0x4 - core index']
  #allocation1 [shape = 'u32[144,128]{1,0:T(1,128)}', space=vmem, size = 0x12000, scoped, tag = 'internal scratch']
  %s0 = inlined_call_operand.vmem [shape: f32[2,128,171], index: 0, kind: input, shape index: {}]
  %s1 = inlined_call_operand.vmem [shape: f32[80,128], index: 1, kind: input, shape index: {}]
  %s2 = inlined_call_operand.vmem [shape: f32[16,1], index: 2, kind: input, shape index: {}]
  %s3 = inlined_call_operand.vmem [shape: f32[3,40,16], index: 3, kind: input, shape index: {}]
  %s4 = inlined_call_operand.vmem [shape: f32[8,1], index: 4, kind: input, shape index: {}]
  %s5 = inlined_call_operand.vmem [shape: f32[6,169,128], index: 5, kind: input, shape index: {}]
  %s6 = inlined_call_operand.vmem [shape: f32[1,128], index: 6, kind: input, shape index: {}]
  %s7 = inlined_call_operand.vmem [shape: f32[128,128], index: 7, kind: input, shape index: {}]
  %s8 = inlined_call_operand.vmem [shape: f32[1,128], index: 8, kind: input, shape index: {}]
  %s9 = inlined_call_operand.hbm [shape: f32[2,1,128], index: 9, kind: output, shape index: {}]
  %s10 = sld [smem:[#allocation0]]
  $region69: #{conv_net_1d_00_forward.1} parent=0
    _
  %s12 = ssub.s32 1, %s10
  %s13 = scalar_select 0, %s12, %s10
  $region1: #{conv_net_1d_00_forward.1} parent=0
    #allocation2 [shape = 'u8[1024]{0}', space=vmem, size = 0x400, scoped, tag = 'output window, operand 0']
    #allocation3 [shape = 's32[2]{0}', space=sflag, size = 0x8, scoped, tag = 'scoped memory for conv_net_1d_00_forward.1']
    %14 = vsyncpa [#allocation3], 0
    %s15 = scalar_lea.sflag [#allocation3], 1
    %16 = vsyncpa %s15, 0
    loop: start=0, step=1, limit=4
    $region2: #{conv_net_1d_00_forward.1} parent=1 // loop_pre_header
      _
    $region3: #{conv_net_1d_00_forward.1} parent=1 // loop_header
      %s18 = sphi 0, %s22
      %p19 = scmp.ge.s32.totalorder %s18, 4
      %s28 = sphi 0, %s30
      %s31 = sphi 0, %s28
      %s32 = sphi 0, %s31
      %s48 = sphi 0, %s32
      %s52 = sphi 0, %s52
      %s54 = sphi 0, %s52
      %s55 = sphi 0, %s54
      %s69 = sphi 0, %s55
      %s73 = sphi 0, %s73
      %s75 = sphi 0, %s73
      %s76 = sphi 0, %s75
      %s90 = sphi 0, %s76
      %s94 = sphi 0, %s94
      %s96 = sphi 0, %s94
      %s97 = sphi 0, %s96
      %s111 = sphi 0, %s97
      %s115 = sphi 0, %s115
      %s117 = sphi 0, %s115
      %s118 = sphi 0, %s117
      %s132 = sphi 0, %s118
      %s136 = sphi 0, %s136
      %s138 = sphi 0, %s136
      %s139 = sphi 0, %s138
      %s153 = sphi 0, %s139
      %s157 = sphi 0, %s157
      %s159 = sphi 0, %s157
      %s160 = sphi 0, %s159
      %s174 = sphi 0, %s160
      %s178 = sphi 0, %s178
      %s180 = sphi 0, %s178
      %s181 = sphi 0, %s180
      %s195 = sphi 0, %s181
      %s199 = sphi 0, %s199
      %s201 = sphi 0, %s199
      %s202 = sphi 0, %s201
      %s216 = sphi 0, %s202
      %s222 = sphi 0, %s224
      %s225 = sphi 0, %s222
      %s226 = sphi 0, %s225
      %s242 = sphi 0, %s226
    $region4: #{conv_net_1d_00_forward.1} parent=1 // loop_header_branch
      %21 = sbr.rel (%p19) target = $region8
    $region5: #{conv_net_1d_00_forward.1} parent=1 // loop_body
      %s23 = ssub.s32 %s18, 1
      %s24 = ssub.s32 %s18, 2
      %s25 = sadd.s32 %s18, 1
      %s26 = ssub.s32 %s18, %s25
      %p27 = scmp.eq.s32.totalorder %s26, 0
      %s29 = sadd.s32 %s28, 1
      %s30 = scalar_select %p27, %s28, %s29
      %p33 = pneg %p27
      %p34 = scmp.eq.s32.totalorder %s18, 1
      %p35 = por %p33, %p34
      %p36 = scmp.ne.s32.totalorder %s28, %s31
      %p37 = scmp.eq.s32.totalorder %s18, 0
      %p38 = por %p36, %p37
      %p39 = scmp.ne.s32.totalorder %s28, %s31
      %p40 = scmp.eq.s32.totalorder %s23, 1
      %p41 = por %p39, %p40
      %p42 = scmp.ne.s32.totalorder %s31, %s32
      %p43 = scmp.eq.s32.totalorder %s23, 0
      %p44 = por %p42, %p43
      %p45 = scmp.ne.s32.totalorder %s31, %s32
      %p46 = scmp.eq.s32.totalorder %s24, 1
      %p47 = por %p45, %p46
      %p49 = scmp.ne.s32.totalorder %s32, %s48
      %p50 = scmp.eq.s32.totalorder %s24, 0
      %p51 = por %p49, %p50
      %s53 = sadd.s32 %s52, 1
      %p56 = scmp.eq.s32.totalorder %s18, 1
      %p57 = scmp.ne.s32.totalorder %s52, %s54
      %p58 = scmp.eq.s32.totalorder %s18, 0
      %p59 = por %p57, %p58
      %p60 = scmp.ne.s32.totalorder %s52, %s54
      %p61 = scmp.eq.s32.totalorder %s23, 1
      %p62 = por %p60, %p61
      %p63 = scmp.ne.s32.totalorder %s54, %s55
      %p64 = scmp.eq.s32.totalorder %s23, 0
      %p65 = por %p63, %p64
      %p66 = scmp.ne.s32.totalorder %s54, %s55
      %p67 = scmp.eq.s32.totalorder %s24, 1
      %p68 = por %p66, %p67
      %p70 = scmp.ne.s32.totalorder %s55, %s69
      %p71 = scmp.eq.s32.totalorder %s24, 0
      %p72 = por %p70, %p71
      %s74 = sadd.s32 %s73, 1
      %p77 = scmp.eq.s32.totalorder %s18, 1
      %p78 = scmp.ne.s32.totalorder %s73, %s75
      %p79 = scmp.eq.s32.totalorder %s18, 0
      %p80 = por %p78, %p79
      %p81 = scmp.ne.s32.totalorder %s73, %s75
      %p82 = scmp.eq.s32.totalorder %s23, 1
      %p83 = por %p81, %p82
      %p84 = scmp.ne.s32.totalorder %s75, %s76
      %p85 = scmp.eq.s32.totalorder %s23, 0
      %p86 = por %p84, %p85
      %p87 = scmp.ne.s32.totalorder %s75, %s76
      %p88 = scmp.eq.s32.totalorder %s24, 1
      %p89 = por %p87, %p88
      %p91 = scmp.ne.s32.totalorder %s76, %s90
      %p92 = scmp.eq.s32.totalorder %s24, 0
      %p93 = por %p91, %p92
      %s95 = sadd.s32 %s94, 1
      %p98 = scmp.eq.s32.totalorder %s18, 1
      %p99 = scmp.ne.s32.totalorder %s94, %s96
      %p100 = scmp.eq.s32.totalorder %s18, 0
      %p101 = por %p99, %p100
      %p102 = scmp.ne.s32.totalorder %s94, %s96
      %p103 = scmp.eq.s32.totalorder %s23, 1
      %p104 = por %p102, %p103
      %p105 = scmp.ne.s32.totalorder %s96, %s97
      %p106 = scmp.eq.s32.totalorder %s23, 0
      %p107 = por %p105, %p106
      %p108 = scmp.ne.s32.totalorder %s96, %s97
      %p109 = scmp.eq.s32.totalorder %s24, 1
      %p110 = por %p108, %p109
      %p112 = scmp.ne.s32.totalorder %s97, %s111
      %p113 = scmp.eq.s32.totalorder %s24, 0
      %p114 = por %p112, %p113
      %s116 = sadd.s32 %s115, 1
      %p119 = scmp.eq.s32.totalorder %s18, 1
      %p120 = scmp.ne.s32.totalorder %s115, %s117
      %p121 = scmp.eq.s32.totalorder %s18, 0
      %p122 = por %p120, %p121
      %p123 = scmp.ne.s32.totalorder %s115, %s117
      %p124 = scmp.eq.s32.totalorder %s23, 1
      %p125 = por %p123, %p124
      %p126 = scmp.ne.s32.totalorder %s117, %s118
      %p127 = scmp.eq.s32.totalorder %s23, 0
      %p128 = por %p126, %p127
      %p129 = scmp.ne.s32.totalorder %s117, %s118
      %p130 = scmp.eq.s32.totalorder %s24, 1
      %p131 = por %p129, %p130
      %p133 = scmp.ne.s32.totalorder %s118, %s132
      %p134 = scmp.eq.s32.totalorder %s24, 0
      %p135 = por %p133, %p134
      %s137 = sadd.s32 %s136, 1
      %p140 = scmp.eq.s32.totalorder %s18, 1
      %p141 = scmp.ne.s32.totalorder %s136, %s138
      %p142 = scmp.eq.s32.totalorder %s18, 0
      %p143 = por %p141, %p142
      %p144 = scmp.ne.s32.totalorder %s136, %s138
      %p145 = scmp.eq.s32.totalorder %s23, 1
      %p146 = por %p144, %p145
      %p147 = scmp.ne.s32.totalorder %s138, %s139
      %p148 = scmp.eq.s32.totalorder %s23, 0
      %p149 = por %p147, %p148
      %p150 = scmp.ne.s32.totalorder %s138, %s139
      %p151 = scmp.eq.s32.totalorder %s24, 1
      %p152 = por %p150, %p151
      %p154 = scmp.ne.s32.totalorder %s139, %s153
      %p155 = scmp.eq.s32.totalorder %s24, 0
      %p156 = por %p154, %p155
      %s158 = sadd.s32 %s157, 1
      %p161 = scmp.eq.s32.totalorder %s18, 1
      %p162 = scmp.ne.s32.totalorder %s157, %s159
      %p163 = scmp.eq.s32.totalorder %s18, 0
      %p164 = por %p162, %p163
      %p165 = scmp.ne.s32.totalorder %s157, %s159
      %p166 = scmp.eq.s32.totalorder %s23, 1
      %p167 = por %p165, %p166
      %p168 = scmp.ne.s32.totalorder %s159, %s160
      %p169 = scmp.eq.s32.totalorder %s23, 0
      %p170 = por %p168, %p169
      %p171 = scmp.ne.s32.totalorder %s159, %s160
      %p172 = scmp.eq.s32.totalorder %s24, 1
      %p173 = por %p171, %p172
      %p175 = scmp.ne.s32.totalorder %s160, %s174
      %p176 = scmp.eq.s32.totalorder %s24, 0
      %p177 = por %p175, %p176
      %s179 = sadd.s32 %s178, 1
      %p182 = scmp.eq.s32.totalorder %s18, 1
      %p183 = scmp.ne.s32.totalorder %s178, %s180
      %p184 = scmp.eq.s32.totalorder %s18, 0
      %p185 = por %p183, %p184
      %p186 = scmp.ne.s32.totalorder %s178, %s180
      %p187 = scmp.eq.s32.totalorder %s23, 1
      %p188 = por %p186, %p187
      %p189 = scmp.ne.s32.totalorder %s180, %s181
      %p190 = scmp.eq.s32.totalorder %s23, 0
      %p191 = por %p189, %p190
      %p192 = scmp.ne.s32.totalorder %s180, %s181
      %p193 = scmp.eq.s32.totalorder %s24, 1
      %p194 = por %p192, %p193
      %p196 = scmp.ne.s32.totalorder %s181, %s195
      %p197 = scmp.eq.s32.totalorder %s24, 0
      %p198 = por %p196, %p197
      %s200 = sadd.s32 %s199, 1
      %p203 = scmp.eq.s32.totalorder %s18, 1
      %p204 = scmp.ne.s32.totalorder %s199, %s201
      %p205 = scmp.eq.s32.totalorder %s18, 0
      %p206 = por %p204, %p205
      %p207 = scmp.ne.s32.totalorder %s199, %s201
      %p208 = scmp.eq.s32.totalorder %s23, 1
      %p209 = por %p207, %p208
      %p210 = scmp.ne.s32.totalorder %s201, %s202
      %p211 = scmp.eq.s32.totalorder %s23, 0
      %p212 = por %p210, %p211
      %p213 = scmp.ne.s32.totalorder %s201, %s202
      %p214 = scmp.eq.s32.totalorder %s24, 1
      %p215 = por %p213, %p214
      %p217 = scmp.ne.s32.totalorder %s202, %s216
      %p218 = scmp.eq.s32.totalorder %s24, 0
      %p219 = por %p217, %p218
      %s220 = ssub.s32 %s18, %s25
      %p221 = scmp.eq.s32.totalorder %s220, 0
      %s223 = sadd.s32 %s222, 1
      %s224 = scalar_select %p221, %s222, %s223
      %p227 = pneg %p221
      %p228 = scmp.eq.s32.totalorder %s18, 1
      %p229 = por %p227, %p228
      %p230 = scmp.ne.s32.totalorder %s222, %s225
      %p231 = scmp.eq.s32.totalorder %s18, 0
      %p232 = por %p230, %p231
      %p233 = scmp.ne.s32.totalorder %s222, %s225
      %p234 = scmp.eq.s32.totalorder %s23, 1
      %p235 = por %p233, %p234
      %p236 = scmp.ne.s32.totalorder %s225, %s226
      %p237 = scmp.eq.s32.totalorder %s23, 0
      %p238 = por %p236, %p237
      %p239 = scmp.ne.s32.totalorder %s225, %s226
      %p240 = scmp.eq.s32.totalorder %s24, 1
      %p241 = por %p239, %p240
      %p243 = scmp.ne.s32.totalorder %s226, %s242
      %p244 = scmp.eq.s32.totalorder %s24, 0
      %p245 = por %p243, %p244
      %p246 = scmp.le.s32.totalorder 1, %s18
      %p247 = scmp.lt.s32.totalorder %s18, 3
      %p248 = pnand %p246, %p247
      %p249 = pneg %p248
      // Predicated region
      $region9: #{conv_net_1d_00_forward.1} parent=5 // pred_check
        _
      $region10: #{conv_net_1d_00_forward.1} parent=5 // pred_check_branch
        %251 = sbr.rel (%p248) target = $region12
      $region11: #{conv_net_1d_00_forward.1} parent=5 // pred_region
        %s252 = ssub.s32 %s18, 1
        // Predicated region
        $region13: #{conv_net_1d_00_forward.1} parent=11 // pred_check
          %p253 = pneg %p65
        $region14: #{conv_net_1d_00_forward.1} parent=11 // pred_check_branch
          %255 = sbr.rel (%p253) target = $region16
        $region15: #{conv_net_1d_00_forward.1} parent=11 // pred_region
          _
        $region16: #{conv_net_1d_00_forward.1} parent=11 // pred_fallthru
          _
        // Predicated region
        $region17: #{conv_net_1d_00_forward.1} parent=11 // pred_check
          %p256 = pneg %p86
        $region18: #{conv_net_1d_00_forward.1} parent=11 // pred_check_branch
          %258 = sbr.rel (%p256) target = $region20
        $region19: #{conv_net_1d_00_forward.1} parent=11 // pred_region
          _
        $region20: #{conv_net_1d_00_forward.1} parent=11 // pred_fallthru
          _
        // Predicated region
        $region21: #{conv_net_1d_00_forward.1} parent=11 // pred_check
          %p259 = pneg %p107
        $region22: #{conv_net_1d_00_forward.1} parent=11 // pred_check_branch
          %261 = sbr.rel (%p259) target = $region24
        $region23: #{conv_net_1d_00_forward.1} parent=11 // pred_region
          _
        $region24: #{conv_net_1d_00_forward.1} parent=11 // pred_fallthru
          _
        // Predicated region
        $region25: #{conv_net_1d_00_forward.1} parent=11 // pred_check
          %p262 = pneg %p128
        $region26: #{conv_net_1d_00_forward.1} parent=11 // pred_check_branch
          %264 = sbr.rel (%p262) target = $region28
        $region27: #{conv_net_1d_00_forward.1} parent=11 // pred_region
          _
        $region28: #{conv_net_1d_00_forward.1} parent=11 // pred_fallthru
          _
        // Predicated region
        $region29: #{conv_net_1d_00_forward.1} parent=11 // pred_check
          %p265 = pneg %p149
        $region30: #{conv_net_1d_00_forward.1} parent=11 // pred_check_branch
          %267 = sbr.rel (%p265) target = $region32
        $region31: #{conv_net_1d_00_forward.1} parent=11 // pred_region
          _
        $region32: #{conv_net_1d_00_forward.1} parent=11 // pred_fallthru
          _
        // Predicated region
        $region33: #{conv_net_1d_00_forward.1} parent=11 // pred_check
          %p268 = pneg %p170
        $region34: #{conv_net_1d_00_forward.1} parent=11 // pred_check_branch
          %270 = sbr.rel (%p268) target = $region36
        $region35: #{conv_net_1d_00_forward.1} parent=11 // pred_region
          _
        $region36: #{conv_net_1d_00_forward.1} parent=11 // pred_fallthru
          _
        // Predicated region
        $region37: #{conv_net_1d_00_forward.1} parent=11 // pred_check
          %p271 = pneg %p191
        $region38: #{conv_net_1d_00_forward.1} parent=11 // pred_check_branch
          %273 = sbr.rel (%p271) target = $region40
        $region39: #{conv_net_1d_00_forward.1} parent=11 // pred_region
          _
        $region40: #{conv_net_1d_00_forward.1} parent=11 // pred_fallthru
          _
        // Predicated region
        $region41: #{conv_net_1d_00_forward.1} parent=11 // pred_check
          %p274 = pneg %p212
        $region42: #{conv_net_1d_00_forward.1} parent=11 // pred_check_branch
          %276 = sbr.rel (%p274) target = $region44
        $region43: #{conv_net_1d_00_forward.1} parent=11 // pred_region
          _
        $region44: #{conv_net_1d_00_forward.1} parent=11 // pred_fallthru
          _
      $region12: #{conv_net_1d_00_forward.1} parent=5 // pred_fallthru
        _
      %p277 = scmp.lt.s32.totalorder %s18, 2
      // Predicated region
      $region45: #{conv_net_1d_00_forward.1} parent=5 // pred_check
        %p278 = pneg %p277
      $region46: #{conv_net_1d_00_forward.1} parent=5 // pred_check_branch
        %280 = sbr.rel (%p278) target = $region48
      $region47: #{conv_net_1d_00_forward.1} parent=5 // pred_region
        // Predicated region
        $region49: #{conv_net_1d_00_forward.1} parent=47 // pred_check
          %p281 = pneg %p38
        $region50: #{conv_net_1d_00_forward.1} parent=47 // pred_check_branch
          %283 = sbr.rel (%p281) target = $region52
        $region51: #{conv_net_1d_00_forward.1} parent=47 // pred_region
          %p284 = scmp.lt.s32.totalorder %s18, 1
          %s285 = scalar_select %p284, %s18, 1
          %s286 = smul.addr %s285, 32
          %s287 = smul.addr %s286, 8
          %s288 = scalar_lea.vmem %s0, %s287
        $region52: #{conv_net_1d_00_forward.1} parent=47 // pred_fallthru
          _
      $region48: #{conv_net_1d_00_forward.1} parent=5 // pred_fallthru
        _
      %p289 = scmp.le.s32.totalorder 1, %s18
      %p290 = scmp.lt.s32.totalorder %s18, 3
      %p291 = pnand %p289, %p290
      %p292 = pneg %p291
      // Predicated region
      $region53: #{conv_net_1d_00_forward.1} parent=5 // pred_check
        _
      $region54: #{conv_net_1d_00_forward.1} parent=5 // pred_check_branch
        %294 = sbr.rel (%p291) target = $region56
      $region55: #{conv_net_1d_00_forward.1} parent=5 // pred_region
        %s295 = ssub.s32 %s18, 1
        %p296 = scmp.lt.s32.totalorder %s23, 1
        %s297 = scalar_select %p296, %s23, 1
        %s298 = smul.addr %s297, 32
        %s299 = smul.addr %s298, 8
        %s300 = scalar_lea.vmem %s0, %s299
        %p301 = pneg %p44
        %p302 = pneg %p41
        %p303 = pneg %p65
        %p304 = pneg %p62
        %p305 = pneg %p86
        %p306 = pneg %p83
        %p307 = pneg %p107
        %p308 = pneg %p104
        %p309 = pneg %p128
        %p310 = pneg %p125
        %p311 = pneg %p149
        %p312 = pneg %p146
        %p313 = pneg %p170
        %p314 = pneg %p167
        %p315 = pneg %p191
        %p316 = pneg %p188
        %p317 = pneg %p212
        %p318 = pneg %p209
        %p319 = pneg %p238
        %p320 = pneg %p235
        %s321 = sand.u32 %s225, 1
        %s322 = scalar_lea.sflag [#allocation3], %s321
        %s323 = sand.u32 %s225, 1
        %s324 = scalar_lea.vmem [#allocation2], %s323
        %p325 = scmp.lt.s32.totalorder %s23, 1
        %s326 = scalar_select %p325, %s23, 1
        %s327 = smul.addr %s326, 32
        %s328 = smul.addr %s327, 8
        %s329 = scalar_lea.vmem %s0, %s328
        %v330 = vld [vmem:[%s1] sm:$0xff]
        %v331 = vld [vmem:[%s1 + $0x8] sm:$0xff]
        %v332 = vld [vmem:[%s1 + $0x10] sm:$0xff]
        %v333 = vld [vmem:[%s1 + $0x18] sm:$0xff]
        %v334 = vld [vmem:[%s1 + $0x20] sm:$0xff]
        %v335 = vld [vmem:[%s1 + $0x28] sm:$0xff]
        %v336 = vld [vmem:[%s1 + $0x30] sm:$0xff]
        %v337 = vld [vmem:[%s1 + $0x38] sm:$0xff]
        %v338 = vld [vmem:[%s1 + $0x40] sm:$0xff]
        %v339 = vld [vmem:[%s1 + $0x48] sm:$0xff]
        %v340 = vld [vmem:[%s329] sm:$0xff]
        %v341 = vld [vmem:[%s329 + $0x8] sm:$0xff]
        %v342 = vld [vmem:[%s329 + $0x10] sm:$0xff]
        %v343 = vld [vmem:[%s329 + $0x18] sm:$0xff]
        %v344 = vld [vmem:[%s329 + $0x20] sm:$0xff]
        %v345 = vld [vmem:[%s329 + $0x28] sm:$0xff]
        %v346 = vld [vmem:[%s329 + $0x30] sm:$0xff]
        %v347 = vld [vmem:[%s329 + $0x38] sm:$0xff]
        %v348 = vld [vmem:[%s329 + $0x40] sm:$0xff]
        %v349 = vld [vmem:[%s329 + $0x48] sm:$0xff]
        %v350 = vld [vmem:[%s329 + $0x50] sm:$0xff]
        %v351 = vld [vmem:[%s329 + $0x58] sm:$0xff]
        %v352 = vld [vmem:[%s329 + $0x60] sm:$0xff]
        %v353 = vld [vmem:[%s329 + $0x68] sm:$0xff]
        %v354 = vld [vmem:[%s329 + $0x70] sm:$0xff]
        %v355 = vld [vmem:[%s329 + $0x78] sm:$0xff]
        %v356 = vld [vmem:[%s329 + $0x80] sm:$0xff]
        %v357 = vld [vmem:[%s329 + $0x88] sm:$0xff]
        %v358 = vld [vmem:[%s329 + $0x90] sm:$0xff]
        %v359 = vld [vmem:[%s329 + $0x98] sm:$0xff]
        %v360 = vld [vmem:[%s329 + $0xa0] sm:$0xff]
        %v361 = vld [vmem:[%s329 + $0xa8] sm:$0xff]
        %v362 = vld [vmem:[%s329 + $0xb0] sm:$0xff]
        %v363 = vld [vmem:[%s329 + $0xb8] sm:$0xff]
        %v364 = vld [vmem:[%s329 + $0xc0] sm:$0xff]
        %v365 = vld [vmem:[%s329 + $0xc8] sm:$0xff]
        %v366 = vld [vmem:[%s329 + $0xd0] sm:$0xff]
        %v367 = vld [vmem:[%s329 + $0xd8] sm:$0xff]
        %v368 = vld [vmem:[%s329 + $0xe0] sm:$0xff]
        %v369 = vld [vmem:[%s329 + $0xe8] sm:$0xff]
        %v370 = vld [vmem:[%s329 + $0xf0] sm:$0xff]
        %v371 = vld [vmem:[%s329 + $0xf8] sm:$0xff]
        %372 = vmatprep.subr.mxu0 %v371
        %373 = vmatpush1.msra.mxu0 %v370
        %374 = vmatprep.subr.mxu0 %v369
        %375 = vmatpush1.msra.mxu0 %v368
        %376 = vmatprep.subr.mxu0 %v367
        %377 = vmatpush1.msra.mxu0 %v366
        %378 = vmatprep.subr.mxu0 %v365
        %379 = vmatpush1.msra.mxu0 %v364
        %380 = vmatprep.subr.mxu0 %v363
        %381 = vmatpush1.msra.mxu0 %v362
        %382 = vmatprep.subr.mxu0 %v361
        %383 = vmatpush1.msra.mxu0 %v360
        %384 = vmatprep.subr.mxu0 %v359
        %385 = vmatpush1.msra.mxu0 %v358
        %386 = vmatprep.subr.mxu0 %v357
        %387 = vmatpush1.msra.mxu0 %v356
        %388 = vmatprep.subr.mxu0 %v355
        %389 = vmatpush1.msra.mxu0 %v354
        %390 = vmatprep.subr.mxu0 %v353
        %391 = vmatpush1.msra.mxu0 %v352
        %392 = vmatprep.subr.mxu0 %v351
        %393 = vmatpush1.msra.mxu0 %v350
        %394 = vmatprep.subr.mxu0 %v349
        %395 = vmatpush1.msra.mxu0 %v348
        %396 = vmatprep.subr.mxu0 %v347
        %397 = vmatpush1.msra.mxu0 %v346
        %398 = vmatprep.subr.mxu0 %v345
        %399 = vmatpush1.msra.mxu0 %v344
        %400 = vmatprep.subr.mxu0 %v343
        %401 = vmatpush1.msra.mxu0 %v342
        %402 = vmatprep.subr.mxu0 %v341
        %403 = vmatpush1.msra.mxu0 %v340
        %404 = vmatprep.subr.mxu0 0.0
        %405 = vmatpush2.msra.mxu0 0.0
        %406 = vmatprep.subr.mxu0 0.0
        %407 = vmatpush2.msra.mxu0 0.0
        %408 = vmatprep.subr.mxu0 0.0
        %409 = vmatpush2.msra.mxu0 0.0
        %410 = vmatprep.subr.mxu0 0.0
        %411 = vmatpush2.msra.mxu0 0.0
        %412 = vmatprep.subr.mxu0 0.0
        %413 = vmatpush2.msra.mxu0 0.0
        %414 = vmatprep.subr.mxu0 0.0
        %415 = vmatpush2.msra.mxu0 0.0
        %416 = vmatprep.subr.mxu0 0.0
        %417 = vmatpush2.msra.mxu0 0.0
        %418 = vmatprep.subr.mxu0 0.0
        %419 = vmatpush2.msra.mxu0 0.0
        %420 = vmatprep.subr.mxu0 0.0
        %421 = vmatpush2.msra.mxu0 0.0
        %422 = vmatprep.subr.mxu0 0.0
        %423 = vmatpush2.msra.mxu0 0.0
        %424 = vmatprep.subr.mxu0 0.0
        %425 = vmatpush2.msra.mxu0 0.0
        %426 = vmatprep.subr.mxu0 0.0
        %427 = vmatpush2.msra.mxu0 0.0
        %428 = vmatprep.subr.mxu0 0.0
        %429 = vmatpush2.msra.mxu0 0.0
        %430 = vmatprep.subr.mxu0 0.0
        %431 = vmatpush2.msra.mxu0 0.0
        %432 = vmatprep.subr.mxu0 0.0
        %433 = vmatpush2.msra.mxu0 0.0
        %434 = vmatprep.subr.mxu0 0.0
        %435 = vmatpush2.msra.mxu0 0.0
        %436 = vmatprep.mubr.f32.mxu0 0.0
        %437 = vmatmul.mubr.f32.gmra.mxu0 %v330
        %v438 = vpop.f32.mrf.mxu0
        %v439 = vadd.f32 0.0, %v438
        %v440 = vpop.f32.mrf.mxu0
        %v441 = vadd.f32 0.0, %v440
        %442 = vmatprep.mubr.f32.mxu0 0.0
        %443 = vmatmul.mubr.f32.gmra.mxu0 %v331
        %v444 = vpop.f32.mrf.mxu0
        %v445 = vadd.f32 0.0, %v444
        %v446 = vpop.f32.mrf.mxu0
        %v447 = vadd.f32 0.0, %v446
        %448 = vmatprep.mubr.f32.mxu0 0.0
        %449 = vmatmul.mubr.f32.gmra.mxu0 %v332
        %v450 = vpop.f32.mrf.mxu0
        %v451 = vadd.f32 0.0, %v450
        %v452 = vpop.f32.mrf.mxu0
        %v453 = vadd.f32 0.0, %v452
        %454 = vmatprep.mubr.f32.mxu0 0.0
        %455 = vmatmul.mubr.f32.gmra.mxu0 %v333
        %v456 = vpop.f32.mrf.mxu0
        %v457 = vadd.f32 0.0, %v456
        %v458 = vpop.f32.mrf.mxu0
        %v459 = vadd.f32 0.0, %v458
        %460 = vmatprep.mubr.f32.mxu0 0.0
        %461 = vmatmul.mubr.f32.gmra.mxu0 %v334
        %v462 = vpop.f32.mrf.mxu0
        %v463 = vadd.f32 0.0, %v462
        %v464 = vpop.f32.mrf.mxu0
        %v465 = vadd.f32 0.0, %v464
        %466 = vmatprep.mubr.f32.mxu0 0.0
        %467 = vmatmul.mubr.f32.gmra.mxu0 %v335
        %v468 = vpop.f32.mrf.mxu0
        %v469 = vadd.f32 0.0, %v468
        %v470 = vpop.f32.mrf.mxu0
        %v471 = vadd.f32 0.0, %v470
        %472 = vmatprep.mubr.f32.mxu0 0.0
        %473 = vmatmul.mubr.f32.gmra.mxu0 %v336
        %v474 = vpop.f32.mrf.mxu0
        %v475 = vadd.f32 0.0, %v474
        %v476 = vpop.f32.mrf.mxu0
        %v477 = vadd.f32 0.0, %v476
        %478 = vmatprep.mubr.f32.mxu0 0.0
        %479 = vmatmul.mubr.f32.gmra.mxu0 %v337
        %v480 = vpop.f32.mrf.mxu0
        %v481 = vadd.f32 0.0, %v480
        %v482 = vpop.f32.mrf.mxu0
        %v483 = vadd.f32 0.0, %v482
        %484 = vmatprep.mubr.f32.mxu0 0.0
        %485 = vmatmul.mubr.f32.gmra.mxu0 %v338
        %v486 = vpop.f32.mrf.mxu0
        %v487 = vadd.f32 0.0, %v486
        %v488 = vpop.f32.mrf.mxu0
        %v489 = vadd.f32 0.0, %v488
        %490 = vmatprep.mubr.f32.mxu0 0.0
        %491 = vmatmul.mubr.f32.gmra.mxu0 %v339
        %v492 = vpop.f32.mrf.mxu0
        %v493 = vadd.f32 0.0, %v492
        %v494 = vpop.f32.mrf.mxu0
        %v495 = vadd.f32 0.0, %v494
        %496 = vdwg.mxu0
        %v497 = vmax.f32 %v439, %v451
        %v498 = vmax.f32 %v441, %v453
        %v499 = vmax.f32 %v445, %v457
        %v500 = vmax.f32 %v447, %v459
        %v501 = vmax.f32 %v497, %v463
        %v502 = vmax.f32 %v498, %v465
        %v503 = vmax.f32 %v499, %v469
        %v504 = vmax.f32 %v500, %v471
        %v505 = vmax.f32 %v501, %v475
        %v506 = vmax.f32 %v502, %v477
        %v507 = vmax.f32 %v503, %v481
        %v508 = vmax.f32 %v504, %v483
        %v509 = vmax.f32 %v505, %v487
        %v510 = vmax.f32 %v506, %v489
        %v511 = vmax.f32 %v507, %v493
        %v512 = vmax.f32 %v508, %v495
        %v513 = vld [vmem:[%s2] sm:$0xff]
        %v514 = vld [vmem:[%s2 + $0x8] sm:$0xff]
        %516 = vset.pattern.permute.xlu0 0
        %517 = vperm.xlu0 %516, %v513
        %v518 = vpop.permute.xlu0 %517
        %521 = vset.pattern.permute.xlu0 0
        %522 = vperm.xlu0 %521, %v514
        %v523 = vpop.permute.xlu0 %522
        %v525 = vadd.f32 %v509, %v518
        %v526 = vadd.f32 %v510, %v518
        %v527 = vadd.f32 %v511, %v523
        %v528 = vadd.f32 %v512, %v523
        %v529 = vmax.f32 %v525, 0.0
        %v530 = vmax.f32 %v526, 0.0
        %v531 = vmax.f32 %v527, 0.0
        %v532 = vmax.f32 %v528, 0.0
        %v533 = vld [vmem:[%s3] sm:$0xff]
        %v534 = vld [vmem:[%s3 + $0x8] sm:$0xff]
        %v535 = vld [vmem:[%s3 + $0x10] sm:$0xff]
        %v536 = vld [vmem:[%s3 + $0x18] sm:$0xff]
        %v537 = vld [vmem:[%s3 + $0x20] sm:$0xff]
        %s538 = scalar_lea.vmem %s3, 40
        %v539 = vld [vmem:[%s538] sm:$0xff]
        %v540 = vld [vmem:[%s538 + $0x8] sm:$0xff]
        %v541 = vld [vmem:[%s538 + $0x10] sm:$0xff]
        %v542 = vld [vmem:[%s538 + $0x18] sm:$0xff]
        %v543 = vld [vmem:[%s538 + $0x20] sm:$0xff]
        %548 = vrot.lane.b32.xlu0 %v529, 127
        %v549 = vpop.permute.xlu0 %548
        %550 = vrot.lane.b32.xlu0 %v530, 127
        %v551 = vpop.permute.xlu0 %550
        %552 = vrot.lane.b32.xlu0 %v531, 127
        %v553 = vpop.permute.xlu0 %552
        %554 = vrot.lane.b32.xlu0 %v532, 127
        %v555 = vpop.permute.xlu0 %554
        %vm556 = vcmask 1039360
        %v557 = vsel %vm556, %v549, %v551
        %v558 = vsel %vm556, %v553, %v555
        %vm563 = vcmask 130048
        %v565 = vsel %vm563, %v539, 0
        %v568 = vsel %vm563, %v540, 0
        %v571 = vsel %vm563, %v541, 0
        %v574 = vsel %vm563, %v542, 0
        %v577 = vsel %vm563, %v543, 0
        %579 = vmatprep.subr.mxu0 0.0
        %580 = vmatpush1.msra.mxu0 0.0
        %581 = vmatprep.subr.mxu0 0.0
        %582 = vmatpush1.msra.mxu0 0.0
        %583 = vmatprep.subr.mxu0 0.0
        %584 = vmatpush1.msra.mxu0 0.0
        %585 = vmatprep.subr.mxu0 0.0
        %586 = vmatpush1.msra.mxu0 0.0
        %587 = vmatprep.subr.mxu0 0.0
        %588 = vmatpush1.msra.mxu0 0.0
        %589 = vmatprep.subr.mxu0 0.0
        %590 = vmatpush1.msra.mxu0 0.0
        %591 = vmatprep.subr.mxu0 0.0
        %592 = vmatpush1.msra.mxu0 0.0
        %593 = vmatprep.subr.mxu0 0.0
        %594 = vmatpush1.msra.mxu0 0.0
        %595 = vmatprep.subr.mxu0 0.0
        %596 = vmatpush1.msra.mxu0 0.0
        %597 = vmatprep.subr.mxu0 0.0
        %598 = vmatpush1.msra.mxu0 0.0
        %599 = vmatprep.subr.mxu0 0.0
        %600 = vmatpush1.msra.mxu0 0.0
        %601 = vmatprep.subr.mxu0 0.0
        %602 = vmatpush1.msra.mxu0 0.0
        %603 = vmatprep.subr.mxu0 0.0
        %604 = vmatpush1.msra.mxu0 0.0
        %605 = vmatprep.subr.mxu0 0.0
        %606 = vmatpush1.msra.mxu0 0.0
        %607 = vmatprep.subr.mxu0 %v555
        %608 = vmatpush1.msra.mxu0 %v558
        %609 = vmatprep.subr.mxu0 %v551
        %610 = vmatpush1.msra.mxu0 %v557
        %611 = vmatprep.subr.mxu0 0.0
        %612 = vmatpush2.msra.mxu0 0.0
        %613 = vmatprep.subr.mxu0 0.0
        %614 = vmatpush2.msra.mxu0 0.0
        %615 = vmatprep.subr.mxu0 0.0
        %616 = vmatpush2.msra.mxu0 0.0
        %617 = vmatprep.subr.mxu0 0.0
        %618 = vmatpush2.msra.mxu0 0.0
        %619 = vmatprep.subr.mxu0 0.0
        %620 = vmatpush2.msra.mxu0 0.0
        %621 = vmatprep.subr.mxu0 0.0
        %622 = vmatpush2.msra.mxu0 0.0
        %623 = vmatprep.subr.mxu0 0.0
        %624 = vmatpush2.msra.mxu0 0.0
        %625 = vmatprep.subr.mxu0 0.0
        %626 = vmatpush2.msra.mxu0 0.0
        %627 = vmatprep.subr.mxu0 0.0
        %628 = vmatpush2.msra.mxu0 0.0
        %629 = vmatprep.subr.mxu0 0.0
        %630 = vmatpush2.msra.mxu0 0.0
        %631 = vmatprep.subr.mxu0 0.0
        %632 = vmatpush2.msra.mxu0 0.0
        %633 = vmatprep.subr.mxu0 0.0
        %634 = vmatpush2.msra.mxu0 0.0
        %635 = vmatprep.subr.mxu0 0.0
        %636 = vmatpush2.msra.mxu0 0.0
        %637 = vmatprep.subr.mxu0 0.0
        %638 = vmatpush2.msra.mxu0 0.0
        %639 = vmatprep.subr.mxu0 0.0
        %640 = vmatpush2.msra.mxu0 0.0
        %641 = vmatprep.subr.mxu0 0.0
        %642 = vmatpush2.msra.mxu0 0.0
        %643 = vmatprep.mubr.f32.mxu0 0.0
        %644 = vmatmul.mubr.f32.gmra.mxu0 %v565
        %v645 = vpop.f32.mrf.mxu0
        %v646 = vadd.f32 0.0, %v645
        %v647 = vpop.f32.mrf.mxu0
        %v648 = vadd.f32 0.0, %v647
        %649 = vmatprep.mubr.f32.mxu0 0.0
        %650 = vmatmul.mubr.f32.gmra.mxu0 %v568
        %v651 = vpop.f32.mrf.mxu0
        %v652 = vadd.f32 0.0, %v651
        %v653 = vpop.f32.mrf.mxu0
        %v654 = vadd.f32 0.0, %v653
        %655 = vmatprep.mubr.f32.mxu0 0.0
        %656 = vmatmul.mubr.f32.gmra.mxu0 %v571
        %v657 = vpop.f32.mrf.mxu0
        %v658 = vadd.f32 0.0, %v657
        %v659 = vpop.f32.mrf.mxu0
        %v660 = vadd.f32 0.0, %v659
        %661 = vmatprep.mubr.f32.mxu0 0.0
        %662 = vmatmul.mubr.f32.gmra.mxu0 %v574
        %v663 = vpop.f32.mrf.mxu0
        %v664 = vadd.f32 0.0, %v663
        %v665 = vpop.f32.mrf.mxu0
        %v666 = vadd.f32 0.0, %v665
        %667 = vmatprep.mubr.f32.mxu0 0.0
        %668 = vmatmul.mubr.f32.gmra.mxu0 %v577
        %v669 = vpop.f32.mrf.mxu0
        %v670 = vadd.f32 0.0, %v669
        %v671 = vpop.f32.mrf.mxu0
        %v672 = vadd.f32 0.0, %v671
        %673 = vdwg.mxu0
        %v675 = vsel %vm563, %v533, 0
        %v678 = vsel %vm563, %v534, 0
        %v681 = vsel %vm563, %v535, 0
        %v684 = vsel %vm563, %v536, 0
        %v687 = vsel %vm563, %v537, 0
        %689 = vmatprep.subr.mxu0 0.0
        %690 = vmatpush1.msra.mxu0 0.0
        %691 = vmatprep.subr.mxu0 0.0
        %692 = vmatpush1.msra.mxu0 0.0
        %693 = vmatprep.subr.mxu0 0.0
        %694 = vmatpush1.msra.mxu0 0.0
        %695 = vmatprep.subr.mxu0 0.0
        %696 = vmatpush1.msra.mxu0 0.0
        %697 = vmatprep.subr.mxu0 0.0
        %698 = vmatpush1.msra.mxu0 0.0
        %699 = vmatprep.subr.mxu0 0.0
        %700 = vmatpush1.msra.mxu0 0.0
        %701 = vmatprep.subr.mxu0 0.0
        %702 = vmatpush1.msra.mxu0 0.0
        %703 = vmatprep.subr.mxu0 0.0
        %704 = vmatpush1.msra.mxu0 0.0
        %705 = vmatprep.subr.mxu0 0.0
        %706 = vmatpush1.msra.mxu0 0.0
        %707 = vmatprep.subr.mxu0 0.0
        %708 = vmatpush1.msra.mxu0 0.0
        %709 = vmatprep.subr.mxu0 0.0
        %710 = vmatpush1.msra.mxu0 0.0
        %711 = vmatprep.subr.mxu0 0.0
        %712 = vmatpush1.msra.mxu0 0.0
        %713 = vmatprep.subr.mxu0 0.0
        %714 = vmatpush1.msra.mxu0 0.0
        %715 = vmatprep.subr.mxu0 0.0
        %716 = vmatpush1.msra.mxu0 0.0
        %717 = vmatprep.subr.mxu0 %v532
        %718 = vmatpush1.msra.mxu0 %v531
        %719 = vmatprep.subr.mxu0 %v530
        %720 = vmatpush1.msra.mxu0 %v529
        %721 = vmatprep.subr.mxu0 0.0
        %722 = vmatpush2.msra.mxu0 0.0
        %723 = vmatprep.subr.mxu0 0.0
        %724 = vmatpush2.msra.mxu0 0.0
        %725 = vmatprep.subr.mxu0 0.0
        %726 = vmatpush2.msra.mxu0 0.0
        %727 = vmatprep.subr.mxu0 0.0
        %728 = vmatpush2.msra.mxu0 0.0
        %729 = vmatprep.subr.mxu0 0.0
        %730 = vmatpush2.msra.mxu0 0.0
        %731 = vmatprep.subr.mxu0 0.0
        %732 = vmatpush2.msra.mxu0 0.0
        %733 = vmatprep.subr.mxu0 0.0
        %734 = vmatpush2.msra.mxu0 0.0
        %735 = vmatprep.subr.mxu0 0.0
        %736 = vmatpush2.msra.mxu0 0.0
        %737 = vmatprep.subr.mxu0 0.0
        %738 = vmatpush2.msra.mxu0 0.0
        %739 = vmatprep.subr.mxu0 0.0
        %740 = vmatpush2.msra.mxu0 0.0
        %741 = vmatprep.subr.mxu0 0.0
        %742 = vmatpush2.msra.mxu0 0.0
        %743 = vmatprep.subr.mxu0 0.0
        %744 = vmatpush2.msra.mxu0 0.0
        %745 = vmatprep.subr.mxu0 0.0
        %746 = vmatpush2.msra.mxu0 0.0
        %747 = vmatprep.subr.mxu0 0.0
        %748 = vmatpush2.msra.mxu0 0.0
        %749 = vmatprep.subr.mxu0 0.0
        %750 = vmatpush2.msra.mxu0 0.0
        %751 = vmatprep.subr.mxu0 0.0
        %752 = vmatpush2.msra.mxu0 0.0
        %753 = vmatprep.mubr.f32.mxu0 0.0
        %754 = vmatmul.mubr.f32.gmra.mxu0 %v675
        %v755 = vpop.f32.mrf.mxu0
        %v756 = vadd.f32 %v646, %v755
        %v757 = vpop.f32.mrf.mxu0
        %v758 = vadd.f32 %v648, %v757
        %759 = vmatprep.mubr.f32.mxu0 0.0
        %760 = vmatmul.mubr.f32.gmra.mxu0 %v678
        %v761 = vpop.f32.mrf.mxu0
        %v762 = vadd.f32 %v652, %v761
        %v763 = vpop.f32.mrf.mxu0
        %v764 = vadd.f32 %v654, %v763
        %765 = vmatprep.mubr.f32.mxu0 0.0
        %766 = vmatmul.mubr.f32.gmra.mxu0 %v681
        %v767 = vpop.f32.mrf.mxu0
        %v768 = vadd.f32 %v658, %v767
        %v769 = vpop.f32.mrf.mxu0
        %v770 = vadd.f32 %v660, %v769
        %771 = vmatprep.mubr.f32.mxu0 0.0
        %772 = vmatmul.mubr.f32.gmra.mxu0 %v684
        %v773 = vpop.f32.mrf.mxu0
        %v774 = vadd.f32 %v664, %v773
        %v775 = vpop.f32.mrf.mxu0
        %v776 = vadd.f32 %v666, %v775
        %777 = vmatprep.mubr.f32.mxu0 0.0
        %778 = vmatmul.mubr.f32.gmra.mxu0 %v687
        %v779 = vpop.f32.mrf.mxu0
        %v780 = vadd.f32 %v670, %v779
        %v781 = vpop.f32.mrf.mxu0
        %v782 = vadd.f32 %v672, %v781
        %783 = vdwg.mxu0
        %s784 = scalar_lea.vmem %s3, 80
        %v785 = vld [vmem:[%s784] sm:$0xff]
        %v786 = vld [vmem:[%s784 + $0x8] sm:$0xff]
        %v787 = vld [vmem:[%s784 + $0x10] sm:$0xff]
        %v788 = vld [vmem:[%s784 + $0x18] sm:$0xff]
        %v789 = vld [vmem:[%s784 + $0x20] sm:$0xff]
        %790 = vrot.lane.b32.xlu0 %v529, 126
        %v791 = vpop.permute.xlu0 %790
        %792 = vrot.lane.b32.xlu0 %v530, 126
        %v793 = vpop.permute.xlu0 %792
        %794 = vrot.lane.b32.xlu0 %v531, 126
        %v795 = vpop.permute.xlu0 %794
        %796 = vrot.lane.b32.xlu0 %v532, 126
        %v797 = vpop.permute.xlu0 %796
        %vm798 = vcmask 1031168
        %v799 = vsel %vm798, %v791, %v793
        %v800 = vsel %vm798, %v795, %v797
        %v806 = vsel %vm563, %v785, 0
        %v809 = vsel %vm563, %v786, 0
        %v812 = vsel %vm563, %v787, 0
        %v815 = vsel %vm563, %v788, 0
        %v818 = vsel %vm563, %v789, 0
        %820 = vmatprep.subr.mxu0 0.0
        %821 = vmatpush1.msra.mxu0 0.0
        %822 = vmatprep.subr.mxu0 0.0
        %823 = vmatpush1.msra.mxu0 0.0
        %824 = vmatprep.subr.mxu0 0.0
        %825 = vmatpush1.msra.mxu0 0.0
        %826 = vmatprep.subr.mxu0 0.0
        %827 = vmatpush1.msra.mxu0 0.0
        %828 = vmatprep.subr.mxu0 0.0
        %829 = vmatpush1.msra.mxu0 0.0
        %830 = vmatprep.subr.mxu0 0.0
        %831 = vmatpush1.msra.mxu0 0.0
        %832 = vmatprep.subr.mxu0 0.0
        %833 = vmatpush1.msra.mxu0 0.0
        %834 = vmatprep.subr.mxu0 0.0
        %835 = vmatpush1.msra.mxu0 0.0
        %836 = vmatprep.subr.mxu0 0.0
        %837 = vmatpush1.msra.mxu0 0.0
        %838 = vmatprep.subr.mxu0 0.0
        %839 = vmatpush1.msra.mxu0 0.0
        %840 = vmatprep.subr.mxu0 0.0
        %841 = vmatpush1.msra.mxu0 0.0
        %842 = vmatprep.subr.mxu0 0.0
        %843 = vmatpush1.msra.mxu0 0.0
        %844 = vmatprep.subr.mxu0 0.0
        %845 = vmatpush1.msra.mxu0 0.0
        %846 = vmatprep.subr.mxu0 0.0
        %847 = vmatpush1.msra.mxu0 0.0
        %848 = vmatprep.subr.mxu0 %v797
        %849 = vmatpush1.msra.mxu0 %v800
        %850 = vmatprep.subr.mxu0 %v793
        %851 = vmatpush1.msra.mxu0 %v799
        %852 = vmatprep.subr.mxu0 0.0
        %853 = vmatpush2.msra.mxu0 0.0
        %854 = vmatprep.subr.mxu0 0.0
        %855 = vmatpush2.msra.mxu0 0.0
        %856 = vmatprep.subr.mxu0 0.0
        %857 = vmatpush2.msra.mxu0 0.0
        %858 = vmatprep.subr.mxu0 0.0
        %859 = vmatpush2.msra.mxu0 0.0
        %860 = vmatprep.subr.mxu0 0.0
        %861 = vmatpush2.msra.mxu0 0.0
        %862 = vmatprep.subr.mxu0 0.0
        %863 = vmatpush2.msra.mxu0 0.0
        %864 = vmatprep.subr.mxu0 0.0
        %865 = vmatpush2.msra.mxu0 0.0
        %866 = vmatprep.subr.mxu0 0.0
        %867 = vmatpush2.msra.mxu0 0.0
        %868 = vmatprep.subr.mxu0 0.0
        %869 = vmatpush2.msra.mxu0 0.0
        %870 = vmatprep.subr.mxu0 0.0
        %871 = vmatpush2.msra.mxu0 0.0
        %872 = vmatprep.subr.mxu0 0.0
        %873 = vmatpush2.msra.mxu0 0.0
        %874 = vmatprep.subr.mxu0 0.0
        %875 = vmatpush2.msra.mxu0 0.0
        %876 = vmatprep.subr.mxu0 0.0
        %877 = vmatpush2.msra.mxu0 0.0
        %878 = vmatprep.subr.mxu0 0.0
        %879 = vmatpush2.msra.mxu0 0.0
        %880 = vmatprep.subr.mxu0 0.0
        %881 = vmatpush2.msra.mxu0 0.0
        %882 = vmatprep.subr.mxu0 0.0
        %883 = vmatpush2.msra.mxu0 0.0
        %884 = vmatprep.mubr.f32.mxu0 0.0
        %885 = vmatmul.mubr.f32.gmra.mxu0 %v806
        %v886 = vpop.f32.mrf.mxu0
        %v887 = vadd.f32 0.0, %v886
        %v888 = vpop.f32.mrf.mxu0
        %v889 = vadd.f32 0.0, %v888
        %890 = vmatprep.mubr.f32.mxu0 0.0
        %891 = vmatmul.mubr.f32.gmra.mxu0 %v809
        %v892 = vpop.f32.mrf.mxu0
        %v893 = vadd.f32 0.0, %v892
        %v894 = vpop.f32.mrf.mxu0
        %v895 = vadd.f32 0.0, %v894
        %896 = vmatprep.mubr.f32.mxu0 0.0
        %897 = vmatmul.mubr.f32.gmra.mxu0 %v812
        %v898 = vpop.f32.mrf.mxu0
        %v899 = vadd.f32 0.0, %v898
        %v900 = vpop.f32.mrf.mxu0
        %v901 = vadd.f32 0.0, %v900
        %902 = vmatprep.mubr.f32.mxu0 0.0
        %903 = vmatmul.mubr.f32.gmra.mxu0 %v815
        %v904 = vpop.f32.mrf.mxu0
        %v905 = vadd.f32 0.0, %v904
        %v906 = vpop.f32.mrf.mxu0
        %v907 = vadd.f32 0.0, %v906
        %908 = vmatprep.mubr.f32.mxu0 0.0
        %909 = vmatmul.mubr.f32.gmra.mxu0 %v818
        %v910 = vpop.f32.mrf.mxu0
        %v911 = vadd.f32 0.0, %v910
        %v912 = vpop.f32.mrf.mxu0
        %v913 = vadd.f32 0.0, %v912
        %914 = vdwg.mxu0
        %v915 = vadd.f32 %v756, %v887
        %v916 = vadd.f32 %v758, %v889
        %v917 = vadd.f32 %v762, %v893
        %v918 = vadd.f32 %v764, %v895
        %v919 = vadd.f32 %v768, %v899
        %v920 = vadd.f32 %v770, %v901
        %v921 = vadd.f32 %v774, %v905
        %v922 = vadd.f32 %v776, %v907
        %v923 = vadd.f32 %v780, %v911
        %v924 = vadd.f32 %v782, %v913
        %v925 = vmax.f32 %v915, %v917
        %v926 = vmax.f32 %v916, %v918
        %v927 = vmax.f32 %v925, %v919
        %v928 = vmax.f32 %v926, %v920
        %v929 = vmax.f32 %v927, %v921
        %v930 = vmax.f32 %v928, %v922
        %v931 = vmax.f32 %v929, %v923
        %v932 = vmax.f32 %v930, %v924
        %v933 = vld [vmem:[%s4] sm:$0xff]
        %935 = vset.pattern.permute.xlu0 0
        %936 = vperm.xlu0 %935, %v933
        %v937 = vpop.permute.xlu0 %936
        %v939 = vadd.f32 %v931, %v937
        %v940 = vadd.f32 %v932, %v937
        %v941 = vmax.f32 %v939, 0.0
        %v942 = vmax.f32 %v940, 0.0
        %v943 = vld [vmem:[%s6] sm:$0x1]
        %v944 = vld [vmem:[%s5] sm:$0xff]
        %v945 = vld [vmem:[%s5 + $0x8] sm:$0xff]
        %v946 = vld [vmem:[%s5 + $0x10] sm:$0xff]
        %v947 = vld [vmem:[%s5 + $0x18] sm:$0xff]
        %v948 = vld [vmem:[%s5 + $0x20] sm:$0xff]
        %v949 = vld [vmem:[%s5 + $0x28] sm:$0xff]
        %v950 = vld [vmem:[%s5 + $0x30] sm:$0xff]
        %v951 = vld [vmem:[%s5 + $0x38] sm:$0xff]
        %v952 = vld [vmem:[%s5 + $0x40] sm:$0xff]
        %v953 = vld [vmem:[%s5 + $0x48] sm:$0xff]
        %v954 = vld [vmem:[%s5 + $0x50] sm:$0xff]
        %v955 = vld [vmem:[%s5 + $0x58] sm:$0xff]
        %v956 = vld [vmem:[%s5 + $0x60] sm:$0xff]
        %v957 = vld [vmem:[%s5 + $0x68] sm:$0xff]
        %v958 = vld [vmem:[%s5 + $0x70] sm:$0xff]
        %v959 = vld [vmem:[%s5 + $0x78] sm:$0xff]
        %v960 = vld [vmem:[%s5 + $0x80] sm:$0xff]
        %v961 = vld [vmem:[%s5 + $0x88] sm:$0xff]
        %v962 = vld [vmem:[%s5 + $0x90] sm:$0xff]
        %v963 = vld [vmem:[%s5 + $0x98] sm:$0xff]
        %v964 = vld [vmem:[%s5 + $0xa0] sm:$0xff]
        %v965 = vld [vmem:[%s5 + $0xa8] sm:$0x1]
        %vm966 = vcmask 334848
        %v968 = vsel %vm966, %v942, 0
        %vm970 = vcmask 1040384
        %v972 = vsel %vm970, %v965, 0
        %974 = vmatprep.subr.mxu0 0.0
        %975 = vmatpush1.msra.mxu0 %v959
        %976 = vmatprep.subr.mxu0 0.0
        %977 = vmatpush1.msra.mxu0 %v958
        %978 = vmatprep.subr.mxu0 0.0
        %979 = vmatpush1.msra.mxu0 %v957
        %980 = vmatprep.subr.mxu0 0.0
        %981 = vmatpush1.msra.mxu0 %v956
        %982 = vmatprep.subr.mxu0 0.0
        %983 = vmatpush1.msra.mxu0 %v955
        %984 = vmatprep.subr.mxu0 0.0
        %985 = vmatpush1.msra.mxu0 %v954
        %986 = vmatprep.subr.mxu0 0.0
        %987 = vmatpush1.msra.mxu0 %v953
        %988 = vmatprep.subr.mxu0 0.0
        %989 = vmatpush1.msra.mxu0 %v952
        %990 = vmatprep.subr.mxu0 0.0
        %991 = vmatpush1.msra.mxu0 %v951
        %992 = vmatprep.subr.mxu0 0.0
        %993 = vmatpush1.msra.mxu0 %v950
        %994 = vmatprep.subr.mxu0 0.0
        %995 = vmatpush1.msra.mxu0 %v949
        %996 = vmatprep.subr.mxu0 0.0
        %997 = vmatpush1.msra.mxu0 %v948
        %998 = vmatprep.subr.mxu0 0.0
        %999 = vmatpush1.msra.mxu0 %v947
        %1000 = vmatprep.subr.mxu0 0.0
        %1001 = vmatpush1.msra.mxu0 %v946
        %1002 = vmatprep.subr.mxu0 0.0
        %1003 = vmatpush1.msra.mxu0 %v945
        %1004 = vmatprep.subr.mxu0 0.0
        %1005 = vmatpush1.msra.mxu0 %v944
        %1006 = vmatprep.subr.mxu0 0.0
        %1007 = vmatpush2.msra.mxu0 0.0
        %1008 = vmatprep.subr.mxu0 0.0
        %1009 = vmatpush2.msra.mxu0 0.0
        %1010 = vmatprep.subr.mxu0 0.0
        %1011 = vmatpush2.msra.mxu0 0.0
        %1012 = vmatprep.subr.mxu0 0.0
        %1013 = vmatpush2.msra.mxu0 0.0
        %1014 = vmatprep.subr.mxu0 0.0
        %1015 = vmatpush2.msra.mxu0 0.0
        %1016 = vmatprep.subr.mxu0 0.0
        %1017 = vmatpush2.msra.mxu0 0.0
        %1018 = vmatprep.subr.mxu0 0.0
        %1019 = vmatpush2.msra.mxu0 0.0
        %1020 = vmatprep.subr.mxu0 0.0
        %1021 = vmatpush2.msra.mxu0 0.0
        %1022 = vmatprep.subr.mxu0 0.0
        %1023 = vmatpush2.msra.mxu0 0.0
        %1024 = vmatprep.subr.mxu0 0.0
        %1025 = vmatpush2.msra.mxu0 0.0
        %1026 = vmatprep.subr.mxu0 0.0
        %1027 = vmatpush2.msra.mxu0 %v972
        %1028 = vmatprep.subr.mxu0 0.0
        %1029 = vmatpush2.msra.mxu0 %v964
        %1030 = vmatprep.subr.mxu0 0.0
        %1031 = vmatpush2.msra.mxu0 %v963
        %1032 = vmatprep.subr.mxu0 0.0
        %1033 = vmatpush2.msra.mxu0 %v962
        %1034 = vmatprep.subr.mxu0 0.0
        %1035 = vmatpush2.msra.mxu0 %v961
        %1036 = vmatprep.subr.mxu0 0.0
        %1037 = vmatpush2.msra.mxu0 %v960
        %1038 = vmatprep.mubr.f32.mxu0 %v968
        %1039 = vmatmul.mubr.f32.gmra.mxu0 %v941
        %v1040 = vpop.f32.mrf.mxu0
        %v1041 = vadd.f32 0.0, %v1040
        %v1042 = vpop.f32.mrf.mxu0
        %1043 = vdwg.mxu0
        %v1044 = vadd.f32 %v943, %v1041
        %s1045 = scalar_lea.vmem %s5, 176
        %v1046 = vld [vmem:[%s1045] sm:$0xff]
        %v1047 = vld [vmem:[%s1045 + $0x8] sm:$0xff]
        %v1048 = vld [vmem:[%s1045 + $0x10] sm:$0xff]
        %v1049 = vld [vmem:[%s1045 + $0x18] sm:$0xff]
        %v1050 = vld [vmem:[%s1045 + $0x20] sm:$0xff]
        %v1051 = vld [vmem:[%s1045 + $0x28] sm:$0xff]
        %v1052 = vld [vmem:[%s1045 + $0x30] sm:$0xff]
        %v1053 = vld [vmem:[%s1045 + $0x38] sm:$0xff]
        %v1054 = vld [vmem:[%s1045 + $0x40] sm:$0xff]
        %v1055 = vld [vmem:[%s1045 + $0x48] sm:$0xff]
        %v1056 = vld [vmem:[%s1045 + $0x50] sm:$0xff]
        %v1057 = vld [vmem:[%s1045 + $0x58] sm:$0xff]
        %v1058 = vld [vmem:[%s1045 + $0x60] sm:$0xff]
        %v1059 = vld [vmem:[%s1045 + $0x68] sm:$0xff]
        %v1060 = vld [vmem:[%s1045 + $0x70] sm:$0xff]
        %v1061 = vld [vmem:[%s1045 + $0x78] sm:$0xff]
        %v1062 = vld [vmem:[%s1045 + $0x80] sm:$0xff]
        %v1063 = vld [vmem:[%s1045 + $0x88] sm:$0xff]
        %v1064 = vld [vmem:[%s1045 + $0x90] sm:$0xff]
        %v1065 = vld [vmem:[%s1045 + $0x98] sm:$0xff]
        %v1066 = vld [vmem:[%s1045 + $0xa0] sm:$0xff]
        %v1067 = vld [vmem:[%s1045 + $0xa8] sm:$0x1]
        %v1069 = vrot.slane %v941, 1
        %v1070 = vrot.slane %v942, 1
        %v1072 = vsel %vm966, %v1070, 0
        %v1075 = vsel %vm970, %v1067, 0
        %1077 = vmatprep.subr.mxu0 0.0
        %1078 = vmatpush1.msra.mxu0 %v1061
        %1079 = vmatprep.subr.mxu0 0.0
        %1080 = vmatpush1.msra.mxu0 %v1060
        %1081 = vmatprep.subr.mxu0 0.0
        %1082 = vmatpush1.msra.mxu0 %v1059
        %1083 = vmatprep.subr.mxu0 0.0
        %1084 = vmatpush1.msra.mxu0 %v1058
        %1085 = vmatprep.subr.mxu0 0.0
        %1086 = vmatpush1.msra.mxu0 %v1057
        %1087 = vmatprep.subr.mxu0 0.0
        %1088 = vmatpush1.msra.mxu0 %v1056
        %1089 = vmatprep.subr.mxu0 0.0
        %1090 = vmatpush1.msra.mxu0 %v1055
        %1091 = vmatprep.subr.mxu0 0.0
        %1092 = vmatpush1.msra.mxu0 %v1054
        %1093 = vmatprep.subr.mxu0 0.0
        %1094 = vmatpush1.msra.mxu0 %v1053
        %1095 = vmatprep.subr.mxu0 0.0
        %1096 = vmatpush1.msra.mxu0 %v1052
        %1097 = vmatprep.subr.mxu0 0.0
        %1098 = vmatpush1.msra.mxu0 %v1051
        %1099 = vmatprep.subr.mxu0 0.0
        %1100 = vmatpush1.msra.mxu0 %v1050
        %1101 = vmatprep.subr.mxu0 0.0
        %1102 = vmatpush1.msra.mxu0 %v1049
        %1103 = vmatprep.subr.mxu0 0.0
        %1104 = vmatpush1.msra.mxu0 %v1048
        %1105 = vmatprep.subr.mxu0 0.0
        %1106 = vmatpush1.msra.mxu0 %v1047
        %1107 = vmatprep.subr.mxu0 0.0
        %1108 = vmatpush1.msra.mxu0 %v1046
        %1109 = vmatprep.subr.mxu0 0.0
        %1110 = vmatpush2.msra.mxu0 0.0
        %1111 = vmatprep.subr.mxu0 0.0
        %1112 = vmatpush2.msra.mxu0 0.0
        %1113 = vmatprep.subr.mxu0 0.0
        %1114 = vmatpush2.msra.mxu0 0.0
        %1115 = vmatprep.subr.mxu0 0.0
        %1116 = vmatpush2.msra.mxu0 0.0
        %1117 = vmatprep.subr.mxu0 0.0
        %1118 = vmatpush2.msra.mxu0 0.0
        %1119 = vmatprep.subr.mxu0 0.0
        %1120 = vmatpush2.msra.mxu0 0.0
        %1121 = vmatprep.subr.mxu0 0.0
        %1122 = vmatpush2.msra.mxu0 0.0
        %1123 = vmatprep.subr.mxu0 0.0
        %1124 = vmatpush2.msra.mxu0 0.0
        %1125 = vmatprep.subr.mxu0 0.0
        %1126 = vmatpush2.msra.mxu0 0.0
        %1127 = vmatprep.subr.mxu0 0.0
        %1128 = vmatpush2.msra.mxu0 0.0
        %1129 = vmatprep.subr.mxu0 0.0
        %1130 = vmatpush2.msra.mxu0 %v1075
        %1131 = vmatprep.subr.mxu0 0.0
        %1132 = vmatpush2.msra.mxu0 %v1066
        %1133 = vmatprep.subr.mxu0 0.0
        %1134 = vmatpush2.msra.mxu0 %v1065
        %1135 = vmatprep.subr.mxu0 0.0
        %1136 = vmatpush2.msra.mxu0 %v1064
        %1137 = vmatprep.subr.mxu0 0.0
        %1138 = vmatpush2.msra.mxu0 %v1063
        %1139 = vmatprep.subr.mxu0 0.0
        %1140 = vmatpush2.msra.mxu0 %v1062
        %1141 = vmatprep.mubr.f32.mxu0 %v1072
        %1142 = vmatmul.mubr.f32.gmra.mxu0 %v1069
        %v1143 = vpop.f32.mrf.mxu0
        %v1144 = vadd.f32 0.0, %v1143
        %v1145 = vpop.f32.mrf.mxu0
        %1146 = vdwg.mxu0
        %v1147 = vadd.f32 %v1044, %v1144
        %s1148 = scalar_lea.vmem %s5, 352
        %v1149 = vld [vmem:[%s1148] sm:$0xff]
        %v1150 = vld [vmem:[%s1148 + $0x8] sm:$0xff]
        %v1151 = vld [vmem:[%s1148 + $0x10] sm:$0xff]
        %v1152 = vld [vmem:[%s1148 + $0x18] sm:$0xff]
        %v1153 = vld [vmem:[%s1148 + $0x20] sm:$0xff]
        %v1154 = vld [vmem:[%s1148 + $0x28] sm:$0xff]
        %v1155 = vld [vmem:[%s1148 + $0x30] sm:$0xff]
        %v1156 = vld [vmem:[%s1148 + $0x38] sm:$0xff]
        %v1157 = vld [vmem:[%s1148 + $0x40] sm:$0xff]
        %v1158 = vld [vmem:[%s1148 + $0x48] sm:$0xff]
        %v1159 = vld [vmem:[%s1148 + $0x50] sm:$0xff]
        %v1160 = vld [vmem:[%s1148 + $0x58] sm:$0xff]
        %v1161 = vld [vmem:[%s1148 + $0x60] sm:$0xff]
        %v1162 = vld [vmem:[%s1148 + $0x68] sm:$0xff]
        %v1163 = vld [vmem:[%s1148 + $0x70] sm:$0xff]
        %v1164 = vld [vmem:[%s1148 + $0x78] sm:$0xff]
        %v1165 = vld [vmem:[%s1148 + $0x80] sm:$0xff]
        %v1166 = vld [vmem:[%s1148 + $0x88] sm:$0xff]
        %v1167 = vld [vmem:[%s1148 + $0x90] sm:$0xff]
        %v1168 = vld [vmem:[%s1148 + $0x98] sm:$0xff]
        %v1169 = vld [vmem:[%s1148 + $0xa0] sm:$0xff]
        %v1170 = vld [vmem:[%s1148 + $0xa8] sm:$0x1]
        %v1171 = vrot.slane %v941, 2
        %v1172 = vrot.slane %v942, 2
        %v1174 = vsel %vm966, %v1172, 0
        %v1177 = vsel %vm970, %v1170, 0
        %1179 = vmatprep.subr.mxu0 0.0
        %1180 = vmatpush1.msra.mxu0 %v1164
        %1181 = vmatprep.subr.mxu0 0.0
        %1182 = vmatpush1.msra.mxu0 %v1163
        %1183 = vmatprep.subr.mxu0 0.0
        %1184 = vmatpush1.msra.mxu0 %v1162
        %1185 = vmatprep.subr.mxu0 0.0
        %1186 = vmatpush1.msra.mxu0 %v1161
        %1187 = vmatprep.subr.mxu0 0.0
        %1188 = vmatpush1.msra.mxu0 %v1160
        %1189 = vmatprep.subr.mxu0 0.0
        %1190 = vmatpush1.msra.mxu0 %v1159
        %1191 = vmatprep.subr.mxu0 0.0
        %1192 = vmatpush1.msra.mxu0 %v1158
        %1193 = vmatprep.subr.mxu0 0.0
        %1194 = vmatpush1.msra.mxu0 %v1157
        %1195 = vmatprep.subr.mxu0 0.0
        %1196 = vmatpush1.msra.mxu0 %v1156
        %1197 = vmatprep.subr.mxu0 0.0
        %1198 = vmatpush1.msra.mxu0 %v1155
        %1199 = vmatprep.subr.mxu0 0.0
        %1200 = vmatpush1.msra.mxu0 %v1154
        %1201 = vmatprep.subr.mxu0 0.0
        %1202 = vmatpush1.msra.mxu0 %v1153
        %1203 = vmatprep.subr.mxu0 0.0
        %1204 = vmatpush1.msra.mxu0 %v1152
        %1205 = vmatprep.subr.mxu0 0.0
        %1206 = vmatpush1.msra.mxu0 %v1151
        %1207 = vmatprep.subr.mxu0 0.0
        %1208 = vmatpush1.msra.mxu0 %v1150
        %1209 = vmatprep.subr.mxu0 0.0
        %1210 = vmatpush1.msra.mxu0 %v1149
        %1211 = vmatprep.subr.mxu0 0.0
        %1212 = vmatpush2.msra.mxu0 0.0
        %1213 = vmatprep.subr.mxu0 0.0
        %1214 = vmatpush2.msra.mxu0 0.0
        %1215 = vmatprep.subr.mxu0 0.0
        %1216 = vmatpush2.msra.mxu0 0.0
        %1217 = vmatprep.subr.mxu0 0.0
        %1218 = vmatpush2.msra.mxu0 0.0
        %1219 = vmatprep.subr.mxu0 0.0
        %1220 = vmatpush2.msra.mxu0 0.0
        %1221 = vmatprep.subr.mxu0 0.0
        %1222 = vmatpush2.msra.mxu0 0.0
        %1223 = vmatprep.subr.mxu0 0.0
        %1224 = vmatpush2.msra.mxu0 0.0
        %1225 = vmatprep.subr.mxu0 0.0
        %1226 = vmatpush2.msra.mxu0 0.0
        %1227 = vmatprep.subr.mxu0 0.0
        %1228 = vmatpush2.msra.mxu0 0.0
        %1229 = vmatprep.subr.mxu0 0.0
        %1230 = vmatpush2.msra.mxu0 0.0
        %1231 = vmatprep.subr.mxu0 0.0
        %1232 = vmatpush2.msra.mxu0 %v1177
        %1233 = vmatprep.subr.mxu0 0.0
        %1234 = vmatpush2.msra.mxu0 %v1169
        %1235 = vmatprep.subr.mxu0 0.0
        %1236 = vmatpush2.msra.mxu0 %v1168
        %1237 = vmatprep.subr.mxu0 0.0
        %1238 = vmatpush2.msra.mxu0 %v1167
        %1239 = vmatprep.subr.mxu0 0.0
        %1240 = vmatpush2.msra.mxu0 %v1166
        %1241 = vmatprep.subr.mxu0 0.0
        %1242 = vmatpush2.msra.mxu0 %v1165
        %1243 = vmatprep.mubr.f32.mxu0 %v1174
        %1244 = vmatmul.mubr.f32.gmra.mxu0 %v1171
        %v1245 = vpop.f32.mrf.mxu0
        %v1246 = vadd.f32 0.0, %v1245
        %v1247 = vpop.f32.mrf.mxu0
        %1248 = vdwg.mxu0
        %v1249 = vadd.f32 %v1147, %v1246
        %s1250 = scalar_lea.vmem %s5, 528
        %v1251 = vld [vmem:[%s1250] sm:$0xff]
        %v1252 = vld [vmem:[%s1250 + $0x8] sm:$0xff]
        %v1253 = vld [vmem:[%s1250 + $0x10] sm:$0xff]
        %v1254 = vld [vmem:[%s1250 + $0x18] sm:$0xff]
        %v1255 = vld [vmem:[%s1250 + $0x20] sm:$0xff]
        %v1256 = vld [vmem:[%s1250 + $0x28] sm:$0xff]
        %v1257 = vld [vmem:[%s1250 + $0x30] sm:$0xff]
        %v1258 = vld [vmem:[%s1250 + $0x38] sm:$0xff]
        %v1259 = vld [vmem:[%s1250 + $0x40] sm:$0xff]
        %v1260 = vld [vmem:[%s1250 + $0x48] sm:$0xff]
        %v1261 = vld [vmem:[%s1250 + $0x50] sm:$0xff]
        %v1262 = vld [vmem:[%s1250 + $0x58] sm:$0xff]
        %v1263 = vld [vmem:[%s1250 + $0x60] sm:$0xff]
        %v1264 = vld [vmem:[%s1250 + $0x68] sm:$0xff]
        %v1265 = vld [vmem:[%s1250 + $0x70] sm:$0xff]
        %v1266 = vld [vmem:[%s1250 + $0x78] sm:$0xff]
        %v1267 = vld [vmem:[%s1250 + $0x80] sm:$0xff]
        %v1268 = vld [vmem:[%s1250 + $0x88] sm:$0xff]
        %v1269 = vld [vmem:[%s1250 + $0x90] sm:$0xff]
        %v1270 = vld [vmem:[%s1250 + $0x98] sm:$0xff]
        %v1271 = vld [vmem:[%s1250 + $0xa0] sm:$0xff]
        %v1272 = vld [vmem:[%s1250 + $0xa8] sm:$0x1]
        %v1273 = vrot.slane %v941, 3
        %v1274 = vrot.slane %v942, 3
        %v1276 = vsel %vm966, %v1274, 0
        %v1279 = vsel %vm970, %v1272, 0
        %1281 = vmatprep.subr.mxu0 0.0
        %1282 = vmatpush1.msra.mxu0 %v1266
        %1283 = vmatprep.subr.mxu0 0.0
        %1284 = vmatpush1.msra.mxu0 %v1265
        %1285 = vmatprep.subr.mxu0 0.0
        %1286 = vmatpush1.msra.mxu0 %v1264
        %1287 = vmatprep.subr.mxu0 0.0
        %1288 = vmatpush1.msra.mxu0 %v1263
        %1289 = vmatprep.subr.mxu0 0.0
        %1290 = vmatpush1.msra.mxu0 %v1262
        %1291 = vmatprep.subr.mxu0 0.0
        %1292 = vmatpush1.msra.mxu0 %v1261
        %1293 = vmatprep.subr.mxu0 0.0
        %1294 = vmatpush1.msra.mxu0 %v1260
        %1295 = vmatprep.subr.mxu0 0.0
        %1296 = vmatpush1.msra.mxu0 %v1259
        %1297 = vmatprep.subr.mxu0 0.0
        %1298 = vmatpush1.msra.mxu0 %v1258
        %1299 = vmatprep.subr.mxu0 0.0
        %1300 = vmatpush1.msra.mxu0 %v1257
        %1301 = vmatprep.subr.mxu0 0.0
        %1302 = vmatpush1.msra.mxu0 %v1256
        %1303 = vmatprep.subr.mxu0 0.0
        %1304 = vmatpush1.msra.mxu0 %v1255
        %1305 = vmatprep.subr.mxu0 0.0
        %1306 = vmatpush1.msra.mxu0 %v1254
        %1307 = vmatprep.subr.mxu0 0.0
        %1308 = vmatpush1.msra.mxu0 %v1253
        %1309 = vmatprep.subr.mxu0 0.0
        %1310 = vmatpush1.msra.mxu0 %v1252
        %1311 = vmatprep.subr.mxu0 0.0
        %1312 = vmatpush1.msra.mxu0 %v1251
        %1313 = vmatprep.subr.mxu0 0.0
        %1314 = vmatpush2.msra.mxu0 0.0
        %1315 = vmatprep.subr.mxu0 0.0
        %1316 = vmatpush2.msra.mxu0 0.0
        %1317 = vmatprep.subr.mxu0 0.0
        %1318 = vmatpush2.msra.mxu0 0.0
        %1319 = vmatprep.subr.mxu0 0.0
        %1320 = vmatpush2.msra.mxu0 0.0
        %1321 = vmatprep.subr.mxu0 0.0
        %1322 = vmatpush2.msra.mxu0 0.0
        %1323 = vmatprep.subr.mxu0 0.0
        %1324 = vmatpush2.msra.mxu0 0.0
        %1325 = vmatprep.subr.mxu0 0.0
        %1326 = vmatpush2.msra.mxu0 0.0
        %1327 = vmatprep.subr.mxu0 0.0
        %1328 = vmatpush2.msra.mxu0 0.0
        %1329 = vmatprep.subr.mxu0 0.0
        %1330 = vmatpush2.msra.mxu0 0.0
        %1331 = vmatprep.subr.mxu0 0.0
        %1332 = vmatpush2.msra.mxu0 0.0
        %1333 = vmatprep.subr.mxu0 0.0
        %1334 = vmatpush2.msra.mxu0 %v1279
        %1335 = vmatprep.subr.mxu0 0.0
        %1336 = vmatpush2.msra.mxu0 %v1271
        %1337 = vmatprep.subr.mxu0 0.0
        %1338 = vmatpush2.msra.mxu0 %v1270
        %1339 = vmatprep.subr.mxu0 0.0
        %1340 = vmatpush2.msra.mxu0 %v1269
        %1341 = vmatprep.subr.mxu0 0.0
        %1342 = vmatpush2.msra.mxu0 %v1268
        %1343 = vmatprep.subr.mxu0 0.0
        %1344 = vmatpush2.msra.mxu0 %v1267
        %1345 = vmatprep.mubr.f32.mxu0 %v1276
        %1346 = vmatmul.mubr.f32.gmra.mxu0 %v1273
        %v1347 = vpop.f32.mrf.mxu0
        %v1348 = vadd.f32 0.0, %v1347
        %v1349 = vpop.f32.mrf.mxu0
        %1350 = vdwg.mxu0
        %v1351 = vadd.f32 %v1249, %v1348
        %s1352 = scalar_lea.vmem %s5, 704
        %v1353 = vld [vmem:[%s1352] sm:$0xff]
        %v1354 = vld [vmem:[%s1352 + $0x8] sm:$0xff]
        %v1355 = vld [vmem:[%s1352 + $0x10] sm:$0xff]
        %v1356 = vld [vmem:[%s1352 + $0x18] sm:$0xff]
        %v1357 = vld [vmem:[%s1352 + $0x20] sm:$0xff]
        %v1358 = vld [vmem:[%s1352 + $0x28] sm:$0xff]
        %v1359 = vld [vmem:[%s1352 + $0x30] sm:$0xff]
        %v1360 = vld [vmem:[%s1352 + $0x38] sm:$0xff]
        %v1361 = vld [vmem:[%s1352 + $0x40] sm:$0xff]
        %v1362 = vld [vmem:[%s1352 + $0x48] sm:$0xff]
        %v1363 = vld [vmem:[%s1352 + $0x50] sm:$0xff]
        %v1364 = vld [vmem:[%s1352 + $0x58] sm:$0xff]
        %v1365 = vld [vmem:[%s1352 + $0x60] sm:$0xff]
        %v1366 = vld [vmem:[%s1352 + $0x68] sm:$0xff]
        %v1367 = vld [vmem:[%s1352 + $0x70] sm:$0xff]
        %v1368 = vld [vmem:[%s1352 + $0x78] sm:$0xff]
        %v1369 = vld [vmem:[%s1352 + $0x80] sm:$0xff]
        %v1370 = vld [vmem:[%s1352 + $0x88] sm:$0xff]
        %v1371 = vld [vmem:[%s1352 + $0x90] sm:$0xff]
        %v1372 = vld [vmem:[%s1352 + $0x98] sm:$0xff]
        %v1373 = vld [vmem:[%s1352 + $0xa0] sm:$0xff]
        %v1374 = vld [vmem:[%s1352 + $0xa8] sm:$0x1]
        %v1375 = vrot.slane %v941, 4
        %v1376 = vrot.slane %v942, 4
        %v1378 = vsel %vm966, %v1376, 0
        %v1381 = vsel %vm970, %v1374, 0
        %1383 = vmatprep.subr.mxu0 0.0
        %1384 = vmatpush1.msra.mxu0 %v1368
        %1385 = vmatprep.subr.mxu0 0.0
        %1386 = vmatpush1.msra.mxu0 %v1367
        %1387 = vmatprep.subr.mxu0 0.0
        %1388 = vmatpush1.msra.mxu0 %v1366
        %1389 = vmatprep.subr.mxu0 0.0
        %1390 = vmatpush1.msra.mxu0 %v1365
        %1391 = vmatprep.subr.mxu0 0.0
        %1392 = vmatpush1.msra.mxu0 %v1364
        %1393 = vmatprep.subr.mxu0 0.0
        %1394 = vmatpush1.msra.mxu0 %v1363
        %1395 = vmatprep.subr.mxu0 0.0
        %1396 = vmatpush1.msra.mxu0 %v1362
        %1397 = vmatprep.subr.mxu0 0.0
        %1398 = vmatpush1.msra.mxu0 %v1361
        %1399 = vmatprep.subr.mxu0 0.0
        %1400 = vmatpush1.msra.mxu0 %v1360
        %1401 = vmatprep.subr.mxu0 0.0
        %1402 = vmatpush1.msra.mxu0 %v1359
        %1403 = vmatprep.subr.mxu0 0.0
        %1404 = vmatpush1.msra.mxu0 %v1358
        %1405 = vmatprep.subr.mxu0 0.0
        %1406 = vmatpush1.msra.mxu0 %v1357
        %1407 = vmatprep.subr.mxu0 0.0
        %1408 = vmatpush1.msra.mxu0 %v1356
        %1409 = vmatprep.subr.mxu0 0.0
        %1410 = vmatpush1.msra.mxu0 %v1355
        %1411 = vmatprep.subr.mxu0 0.0
        %1412 = vmatpush1.msra.mxu0 %v1354
        %1413 = vmatprep.subr.mxu0 0.0
        %1414 = vmatpush1.msra.mxu0 %v1353
        %1415 = vmatprep.subr.mxu0 0.0
        %1416 = vmatpush2.msra.mxu0 0.0
        %1417 = vmatprep.subr.mxu0 0.0
        %1418 = vmatpush2.msra.mxu0 0.0
        %1419 = vmatprep.subr.mxu0 0.0
        %1420 = vmatpush2.msra.mxu0 0.0
        %1421 = vmatprep.subr.mxu0 0.0
        %1422 = vmatpush2.msra.mxu0 0.0
        %1423 = vmatprep.subr.mxu0 0.0
        %1424 = vmatpush2.msra.mxu0 0.0
        %1425 = vmatprep.subr.mxu0 0.0
        %1426 = vmatpush2.msra.mxu0 0.0
        %1427 = vmatprep.subr.mxu0 0.0
        %1428 = vmatpush2.msra.mxu0 0.0
        %1429 = vmatprep.subr.mxu0 0.0
        %1430 = vmatpush2.msra.mxu0 0.0
        %1431 = vmatprep.subr.mxu0 0.0
        %1432 = vmatpush2.msra.mxu0 0.0
        %1433 = vmatprep.subr.mxu0 0.0
        %1434 = vmatpush2.msra.mxu0 0.0
        %1435 = vmatprep.subr.mxu0 0.0
        %1436 = vmatpush2.msra.mxu0 %v1381
        %1437 = vmatprep.subr.mxu0 0.0
        %1438 = vmatpush2.msra.mxu0 %v1373
        %1439 = vmatprep.subr.mxu0 0.0
        %1440 = vmatpush2.msra.mxu0 %v1372
        %1441 = vmatprep.subr.mxu0 0.0
        %1442 = vmatpush2.msra.mxu0 %v1371
        %1443 = vmatprep.subr.mxu0 0.0
        %1444 = vmatpush2.msra.mxu0 %v1370
        %1445 = vmatprep.subr.mxu0 0.0
        %1446 = vmatpush2.msra.mxu0 %v1369
        %1447 = vmatprep.mubr.f32.mxu0 %v1378
        %1448 = vmatmul.mubr.f32.gmra.mxu0 %v1375
        %v1449 = vpop.f32.mrf.mxu0
        %v1450 = vadd.f32 0.0, %v1449
        %v1451 = vpop.f32.mrf.mxu0
        %1452 = vdwg.mxu0
        %v1453 = vadd.f32 %v1351, %v1450
        %s1454 = scalar_lea.vmem %s5, 880
        %v1455 = vld [vmem:[%s1454] sm:$0xff]
        %v1456 = vld [vmem:[%s1454 + $0x8] sm:$0xff]
        %v1457 = vld [vmem:[%s1454 + $0x10] sm:$0xff]
        %v1458 = vld [vmem:[%s1454 + $0x18] sm:$0xff]
        %v1459 = vld [vmem:[%s1454 + $0x20] sm:$0xff]
        %v1460 = vld [vmem:[%s1454 + $0x28] sm:$0xff]
        %v1461 = vld [vmem:[%s1454 + $0x30] sm:$0xff]
        %v1462 = vld [vmem:[%s1454 + $0x38] sm:$0xff]
        %v1463 = vld [vmem:[%s1454 + $0x40] sm:$0xff]
        %v1464 = vld [vmem:[%s1454 + $0x48] sm:$0xff]
        %v1465 = vld [vmem:[%s1454 + $0x50] sm:$0xff]
        %v1466 = vld [vmem:[%s1454 + $0x58] sm:$0xff]
        %v1467 = vld [vmem:[%s1454 + $0x60] sm:$0xff]
        %v1468 = vld [vmem:[%s1454 + $0x68] sm:$0xff]
        %v1469 = vld [vmem:[%s1454 + $0x70] sm:$0xff]
        %v1470 = vld [vmem:[%s1454 + $0x78] sm:$0xff]
        %v1471 = vld [vmem:[%s1454 + $0x80] sm:$0xff]
        %v1472 = vld [vmem:[%s1454 + $0x88] sm:$0xff]
        %v1473 = vld [vmem:[%s1454 + $0x90] sm:$0xff]
        %v1474 = vld [vmem:[%s1454 + $0x98] sm:$0xff]
        %v1475 = vld [vmem:[%s1454 + $0xa0] sm:$0xff]
        %v1476 = vld [vmem:[%s1454 + $0xa8] sm:$0x1]
        %v1477 = vrot.slane %v941, 5
        %v1478 = vrot.slane %v942, 5
        %v1480 = vsel %vm966, %v1478, 0
        %v1483 = vsel %vm970, %v1476, 0
        %1485 = vmatprep.subr.mxu0 0.0
        %1486 = vmatpush1.msra.mxu0 %v1470
        %1487 = vmatprep.subr.mxu0 0.0
        %1488 = vmatpush1.msra.mxu0 %v1469
        %1489 = vmatprep.subr.mxu0 0.0
        %1490 = vmatpush1.msra.mxu0 %v1468
        %1491 = vmatprep.subr.mxu0 0.0
        %1492 = vmatpush1.msra.mxu0 %v1467
        %1493 = vmatprep.subr.mxu0 0.0
        %1494 = vmatpush1.msra.mxu0 %v1466
        %1495 = vmatprep.subr.mxu0 0.0
        %1496 = vmatpush1.msra.mxu0 %v1465
        %1497 = vmatprep.subr.mxu0 0.0
        %1498 = vmatpush1.msra.mxu0 %v1464
        %1499 = vmatprep.subr.mxu0 0.0
        %1500 = vmatpush1.msra.mxu0 %v1463
        %1501 = vmatprep.subr.mxu0 0.0
        %1502 = vmatpush1.msra.mxu0 %v1462
        %1503 = vmatprep.subr.mxu0 0.0
        %1504 = vmatpush1.msra.mxu0 %v1461
        %1505 = vmatprep.subr.mxu0 0.0
        %1506 = vmatpush1.msra.mxu0 %v1460
        %1507 = vmatprep.subr.mxu0 0.0
        %1508 = vmatpush1.msra.mxu0 %v1459
        %1509 = vmatprep.subr.mxu0 0.0
        %1510 = vmatpush1.msra.mxu0 %v1458
        %1511 = vmatprep.subr.mxu0 0.0
        %1512 = vmatpush1.msra.mxu0 %v1457
        %1513 = vmatprep.subr.mxu0 0.0
        %1514 = vmatpush1.msra.mxu0 %v1456
        %1515 = vmatprep.subr.mxu0 0.0
        %1516 = vmatpush1.msra.mxu0 %v1455
        %1517 = vmatprep.subr.mxu0 0.0
        %1518 = vmatpush2.msra.mxu0 0.0
        %1519 = vmatprep.subr.mxu0 0.0
        %1520 = vmatpush2.msra.mxu0 0.0
        %1521 = vmatprep.subr.mxu0 0.0
        %1522 = vmatpush2.msra.mxu0 0.0
        %1523 = vmatprep.subr.mxu0 0.0
        %1524 = vmatpush2.msra.mxu0 0.0
        %1525 = vmatprep.subr.mxu0 0.0
        %1526 = vmatpush2.msra.mxu0 0.0
        %1527 = vmatprep.subr.mxu0 0.0
        %1528 = vmatpush2.msra.mxu0 0.0
        %1529 = vmatprep.subr.mxu0 0.0
        %1530 = vmatpush2.msra.mxu0 0.0
        %1531 = vmatprep.subr.mxu0 0.0
        %1532 = vmatpush2.msra.mxu0 0.0
        %1533 = vmatprep.subr.mxu0 0.0
        %1534 = vmatpush2.msra.mxu0 0.0
        %1535 = vmatprep.subr.mxu0 0.0
        %1536 = vmatpush2.msra.mxu0 0.0
        %1537 = vmatprep.subr.mxu0 0.0
        %1538 = vmatpush2.msra.mxu0 %v1483
        %1539 = vmatprep.subr.mxu0 0.0
        %1540 = vmatpush2.msra.mxu0 %v1475
        %1541 = vmatprep.subr.mxu0 0.0
        %1542 = vmatpush2.msra.mxu0 %v1474
        %1543 = vmatprep.subr.mxu0 0.0
        %1544 = vmatpush2.msra.mxu0 %v1473
        %1545 = vmatprep.subr.mxu0 0.0
        %1546 = vmatpush2.msra.mxu0 %v1472
        %1547 = vmatprep.subr.mxu0 0.0
        %1548 = vmatpush2.msra.mxu0 %v1471
        %1549 = vmatprep.mubr.f32.mxu0 %v1480
        %1550 = vmatmul.mubr.f32.gmra.mxu0 %v1477
        %v1551 = vpop.f32.mrf.mxu0
        %v1552 = vadd.f32 0.0, %v1551
        %v1553 = vpop.f32.mrf.mxu0
        %1554 = vdwg.mxu0
        %v1555 = vadd.f32 %v1453, %v1552
        %v1556 = vmax.f32 %v1555, 0.0
        %v1557 = vld [vmem:[%s7] sm:$0xff]
        %v1558 = vld [vmem:[%s7 + $0x8] sm:$0xff]
        %v1559 = vld [vmem:[%s7 + $0x10] sm:$0xff]
        %v1560 = vld [vmem:[%s7 + $0x18] sm:$0xff]
        %v1561 = vld [vmem:[%s7 + $0x20] sm:$0xff]
        %v1562 = vld [vmem:[%s7 + $0x28] sm:$0xff]
        %v1563 = vld [vmem:[%s7 + $0x30] sm:$0xff]
        %v1564 = vld [vmem:[%s7 + $0x38] sm:$0xff]
        %v1565 = vld [vmem:[%s7 + $0x40] sm:$0xff]
        %v1566 = vld [vmem:[%s7 + $0x48] sm:$0xff]
        %v1567 = vld [vmem:[%s7 + $0x50] sm:$0xff]
        %v1568 = vld [vmem:[%s7 + $0x58] sm:$0xff]
        %v1569 = vld [vmem:[%s7 + $0x60] sm:$0xff]
        %v1570 = vld [vmem:[%s7 + $0x68] sm:$0xff]
        %v1571 = vld [vmem:[%s7 + $0x70] sm:$0xff]
        %v1572 = vld [vmem:[%s7 + $0x78] sm:$0xff]
        %v1573 = vld [vmem:[%s8] sm:$0x1]
        %1574 = vmatprep.subr.mxu0 0.0
        %1575 = vmatpush1.msra.mxu0 %v1572
        %1576 = vmatprep.subr.mxu0 0.0
        %1577 = vmatpush1.msra.mxu0 %v1571
        %1578 = vmatprep.subr.mxu0 0.0
        %1579 = vmatpush1.msra.mxu0 %v1570
        %1580 = vmatprep.subr.mxu0 0.0
        %1581 = vmatpush1.msra.mxu0 %v1569
        %1582 = vmatprep.subr.mxu0 0.0
        %1583 = vmatpush1.msra.mxu0 %v1568
        %1584 = vmatprep.subr.mxu0 0.0
        %1585 = vmatpush1.msra.mxu0 %v1567
        %1586 = vmatprep.subr.mxu0 0.0
        %1587 = vmatpush1.msra.mxu0 %v1566
        %1588 = vmatprep.subr.mxu0 0.0
        %1589 = vmatpush1.msra.mxu0 %v1565
        %1590 = vmatprep.subr.mxu0 0.0
        %1591 = vmatpush1.msra.mxu0 %v1564
        %1592 = vmatprep.subr.mxu0 0.0
        %1593 = vmatpush1.msra.mxu0 %v1563
        %1594 = vmatprep.subr.mxu0 0.0
        %1595 = vmatpush1.msra.mxu0 %v1562
        %1596 = vmatprep.subr.mxu0 0.0
        %1597 = vmatpush1.msra.mxu0 %v1561
        %1598 = vmatprep.subr.mxu0 0.0
        %1599 = vmatpush1.msra.mxu0 %v1560
        %1600 = vmatprep.subr.mxu0 0.0
        %1601 = vmatpush1.msra.mxu0 %v1559
        %1602 = vmatprep.subr.mxu0 0.0
        %1603 = vmatpush1.msra.mxu0 %v1558
        %1604 = vmatprep.subr.mxu0 0.0
        %1605 = vmatpush1.msra.mxu0 %v1557
        %1606 = vmatprep.subr.mxu0 0.0
        %1607 = vmatpush2.msra.mxu0 0.0
        %1608 = vmatprep.subr.mxu0 0.0
        %1609 = vmatpush2.msra.mxu0 0.0
        %1610 = vmatprep.subr.mxu0 0.0
        %1611 = vmatpush2.msra.mxu0 0.0
        %1612 = vmatprep.subr.mxu0 0.0
        %1613 = vmatpush2.msra.mxu0 0.0
        %1614 = vmatprep.subr.mxu0 0.0
        %1615 = vmatpush2.msra.mxu0 0.0
        %1616 = vmatprep.subr.mxu0 0.0
        %1617 = vmatpush2.msra.mxu0 0.0
        %1618 = vmatprep.subr.mxu0 0.0
        %1619 = vmatpush2.msra.mxu0 0.0
        %1620 = vmatprep.subr.mxu0 0.0
        %1621 = vmatpush2.msra.mxu0 0.0
        %1622 = vmatprep.subr.mxu0 0.0
        %1623 = vmatpush2.msra.mxu0 0.0
        %1624 = vmatprep.subr.mxu0 0.0
        %1625 = vmatpush2.msra.mxu0 0.0
        %1626 = vmatprep.subr.mxu0 0.0
        %1627 = vmatpush2.msra.mxu0 0.0
        %1628 = vmatprep.subr.mxu0 0.0
        %1629 = vmatpush2.msra.mxu0 0.0
        %1630 = vmatprep.subr.mxu0 0.0
        %1631 = vmatpush2.msra.mxu0 0.0
        %1632 = vmatprep.subr.mxu0 0.0
        %1633 = vmatpush2.msra.mxu0 0.0
        %1634 = vmatprep.subr.mxu0 0.0
        %1635 = vmatpush2.msra.mxu0 0.0
        %1636 = vmatprep.subr.mxu0 0.0
        %1637 = vmatpush2.msra.mxu0 0.0
        %1638 = vmatprep.mubr.f32.mxu0 0.0
        %1639 = vmatmul.mubr.f32.gmra.mxu0 %v1556
        %v1640 = vpop.f32.mrf.mxu0
        %v1641 = vadd.f32 %v1573, %v1640
        %v1642 = vpop.f32.mrf.mxu0
        %1643 = vdwg.mxu0
        %1644 = vst [vmem:[%s324] sm:$0x1] %v1641
        %s1645 = sand.u32 %s225, 1
        %s1646 = scalar_lea.sflag [#allocation3], %s1645
        %s1647 = sand.u32 %s225, 1
        %s1648 = scalar_lea.vmem [#allocation2], %s1647
        // Predicated region
        $region57: #{conv_net_1d_00_forward.1} parent=55 // pred_check
          %p1649 = pneg %p235
        $region58: #{conv_net_1d_00_forward.1} parent=55 // pred_check_branch
          %1651 = sbr.rel (%p1649) target = $region60
        $region59: #{conv_net_1d_00_forward.1} parent=55 // pred_region
          %s1653 = ssub.s32 16, 16
          %1654 = vsyncadd %s1646, %s1653
          %s1655 = smul.addr %s23, 16
          %s1656 = scalar_lea.hbm %s9, %s1655
          %s1658 = sshll.u32 %s1648, 4
          %s1659 = int_to_ptr.vmem [resolvable:$true] %s1658
          %1661 = dma.vmem_to_hbm [thread:$0]  %s1659, 16, %s1656, %s1646
        $region60: #{conv_net_1d_00_forward.1} parent=55 // pred_fallthru
          _
      $region56: #{conv_net_1d_00_forward.1} parent=5 // pred_fallthru
        _
      %p1662 = scmp.le.s32.totalorder 2, %s18
      // Predicated region
      $region61: #{conv_net_1d_00_forward.1} parent=5 // pred_check
        %p1663 = pneg %p1662
      $region62: #{conv_net_1d_00_forward.1} parent=5 // pred_check_branch
        %1665 = sbr.rel (%p1663) target = $region64
      $region63: #{conv_net_1d_00_forward.1} parent=5 // pred_region
        %s1666 = ssub.s32 %s18, 2
        // Predicated region
        $region65: #{conv_net_1d_00_forward.1} parent=63 // pred_check
          %p1667 = pneg %p241
        $region66: #{conv_net_1d_00_forward.1} parent=63 // pred_check_branch
          %1669 = sbr.rel (%p1667) target = $region68
        $region67: #{conv_net_1d_00_forward.1} parent=63 // pred_region
          %s1670 = sand.u32 %s226, 1
          %s1671 = scalar_lea.sflag [#allocation3], %s1670
          %s1672 = sand.u32 %s226, 1
          %s1673 = scalar_lea.vmem [#allocation2], %s1672
          %1674 = dma.done %s1671, 16
        $region68: #{conv_net_1d_00_forward.1} parent=63 // pred_fallthru
          _
      $region64: #{conv_net_1d_00_forward.1} parent=5 // pred_fallthru
        _
    $region6: #{conv_net_1d_00_forward.1} parent=1 // loop_footer
      %s22 = sadd.s32 1, %s18
    $region7: #{conv_net_1d_00_forward.1} parent=1 // loop_footer_branch
      %17 = sbr.rel target = $region3
    $region8: #{conv_net_1d_00_forward.1} parent=1 // loop_exit
      _
    %1675 = vsyncpa [#allocation3], 1
    %s1676 = scalar_lea.sflag [#allocation3], 1
    %1677 = vsyncpa %s1676, 1

</llo_original>
